<compile_context>
chip_gen: v6e
topology: v6e:2x2x1
jax: 0.10.0
libtpu: 0.0.40
codegen_flags: <defaults>
</compile_context>

<pallas_src>
import jax
import jax.numpy as jnp
from jax.experimental import pallas as pl
from jax.experimental.pallas import tpu as pltpu


def _round_up(x, m):
    return ((x + m - 1) // m) * m


def _elu(x):
    # ELU(alpha=1). Forward-only: jnp.where selects lanes, so an overflowing exp()
    # in the not-taken branch cannot leak into the result -> no clamp needed.
    return jnp.where(x > 0, x, jnp.exp(x) - 1.0)


def _make_kernel(E, H, HD, HD_pad, H_pad, NH, TB, N):
    TWO_H = 2 * H
    C2 = HD_pad + H_pad
    M = TB * N

    def kernel(x_ref, w_ref, b_ref, out_ref):
        # bf16 cast inside the kernel: one f32 HBM read, no wrapper-side copy pass.
        x = x_ref[...].astype(jnp.bfloat16)                                # (M, E)

        w1 = w_ref[0:E, 0:TWO_H]                                           # [mw1 | aw1]
        w2 = w_ref[E:E + TWO_H, 0:C2]                                      # block-diag
        w3 = w_ref[E + TWO_H:E + TWO_H + H_pad, 0:HD]                      # aw3 padded

        b1 = b_ref[0:1, 0:TWO_H]
        b2 = b_ref[1:2, 0:C2]
        b3 = b_ref[2:3, 0:HD]
        rep = b_ref[3:3 + NH, 0:HD]                                        # 0/1 repeat matrix

        # stage 1: both branches' first Linear in one MXU pass, ELU in f32.
        h = jnp.dot(x, w1, preferred_element_type=jnp.float32) + b1        # (M, 2H)
        h = _elu(h)

        # stage 2: block-diagonal fused second Linear; both output halves are
        # 128-lane-tile aligned (x_enc in lanes [0:HD), attn hidden in [HD_pad:..)).
        h2 = jnp.dot(h.astype(jnp.bfloat16), w2,
                     preferred_element_type=jnp.float32) + b2              # (M, C2)
        x_enc = h2[:, 0:HD]                                                # f32, stays f32
        a2 = _elu(h2[:, HD_pad:HD_pad + H_pad])                            # (M, H_pad)

        # stage 3: attention-head logits (columns >= NH are zero padding; padded a2
        # columns hit zero weight rows, so they contribute nothing).
        logits = jnp.dot(a2.astype(jnp.bfloat16), w3,
                         preferred_element_type=jnp.float32) + b3          # (M, HD)

        # per-instance softmax over the N embeddings (f32, approx reciprocal on EUP).
        lg = logits[:, 0:NH].reshape(TB, N, NH)                            # (TB, N, NH)
        mx = jnp.max(lg, axis=1, keepdims=True)
        p = jnp.exp(lg - mx)
        denom = jnp.sum(p, axis=1, keepdims=True)
        attn = p * pl.reciprocal(denom, approx=True)                       # (TB, N, NH)

        # Tail: expand head weights to head_size lanes with one tiny f32 matmul
        # against the constant repeat matrix, then f32 VPU multiply with x_enc and
        # an 8-sublane reduce over the N axis. Output block is (TB, 128): lane-dense.
        attn_exp = jnp.dot(attn.reshape(M, NH), rep,
                           preferred_element_type=jnp.float32)             # (M, HD)
        out_ref[...] = jnp.sum((x_enc * attn_exp).reshape(TB, N, HD), axis=1)

    return kernel


def pack_params(p, embedding_size, hidden_size, head_size, n_heads):
    """Fuse the 5 Linears into 3 matmuls and pack into one bf16 weight slab
    (rows stacked, columns padded to a common width) + one f32 bias/constant slab."""
    E, H = embedding_size, hidden_size
    HD = head_size * n_heads
    HD_pad = _round_up(HD, 128)
    H_pad = _round_up(H, 128)
    C2 = HD_pad + H_pad
    C = max(2 * H, C2, HD)

    w1 = jnp.concatenate([p["mw1"], p["aw1"]], axis=1)                     # (E, 2H)
    b1 = jnp.concatenate([p["mb1"], p["ab1"]], axis=1)                     # (1, 2H)

    # Stage-2 block-diagonal weight, lane-tile aligned: x_enc cols [0:HD),
    # attention-hidden cols [HD_pad : HD_pad+H).
    w2 = jnp.zeros((2 * H, C2), jnp.float32)
    w2 = w2.at[0:H, 0:HD].set(p["mw2"])
    w2 = w2.at[H:2 * H, HD_pad:HD_pad + H].set(p["aw2"])
    b2 = jnp.zeros((1, C2), jnp.float32)
    b2 = b2.at[:, 0:HD].set(p["mb2"])
    b2 = b2.at[:, HD_pad:HD_pad + H].set(p["ab2"])

    w3 = jnp.zeros((H_pad, HD), jnp.float32).at[0:H, 0:n_heads].set(p["aw3"])
    b3 = jnp.zeros((1, HD), jnp.float32).at[:, 0:n_heads].set(p["ab3"])

    # Constant 0/1 repeat matrix: rep[h, j] = 1 iff j // head_size == h.
    rep = (jnp.arange(HD)[None, :] // head_size
           == jnp.arange(n_heads)[:, None]).astype(jnp.float32)            # (NH, HD)

    def pad_cols(a):
        return jnp.pad(a, ((0, 0), (0, C - a.shape[1])))

    w_slab = jnp.concatenate([pad_cols(w1), pad_cols(w2), pad_cols(w3)],
                             axis=0).astype(jnp.bfloat16)                  # (E+2H+H_pad, C)
    b_slab = jnp.concatenate([pad_cols(b1), pad_cols(b2), pad_cols(b3),
                              pad_cols(rep)], axis=0)                      # (3+NH, C) f32
    return w_slab, b_slab


def _pick_batch_tile(B, batch_tile):
    """Largest divisor of B that is <= batch_tile, a multiple of 8, and (when
    possible) leaves >= 2 grid steps so v7x's second TensorCore has work."""
    divs = [d for d in range(8, B + 1, 8) if B % d == 0 and d <= batch_tile]
    assert divs, "batch must have a divisor that is a multiple of 8 and <= batch_tile"
    two_step = [d for d in divs if B // d >= 2]
    return max(two_step) if two_step else max(divs)


def embedding_combiner(x, params, *, head_size, n_heads, batch_tile=256):
    """Batched EmbeddingCombiner forward.

    x: (B, N, E) f32 -- B independent combiner instances, each combining N embeddings.
    returns: (B, n_heads * head_size) f32
    """
    B, N, E = x.shape
    H = params["mw1"].shape[1]
    HD = head_size * n_heads
    HD_pad = _round_up(HD, 128)
    H_pad = _round_up(H, 128)
    assert HD % 128 == 0, "head_size * n_heads must be a multiple of 128 (lane tile)"
    assert B % 8 == 0, "batch must be a multiple of 8"

    TB = _pick_batch_tile(B, batch_tile)
    assert B % TB == 0 and TB % 8 == 0 and (TB * N) % 8 == 0

    w_slab, b_slab = pack_params(params, E, H, head_size, n_heads)
    R_w, C = w_slab.shape
    R_b = b_slab.shape[0]

    x2 = x.reshape(B * N, E)        # stays f32; cast to bf16 inside the kernel

    kernel = _make_kernel(E, H, HD, HD_pad, H_pad, n_heads, TB, N)

    out = pl.pallas_call(
        kernel,
        out_shape=jax.ShapeDtypeStruct((B, HD), jnp.float32),
        grid=(B // TB,),
        in_specs=[
            pl.BlockSpec((TB * N, E), lambda i: (i, 0)),   # per-step activation tile
            pl.BlockSpec((R_w, C), lambda i: (0, 0)),      # weight slab stays resident
            pl.BlockSpec((R_b, C), lambda i: (0, 0)),      # bias/constant slab resident
        ],
        out_specs=pl.BlockSpec((TB, HD), lambda i: (i, 0)),
        compiler_params=pltpu.CompilerParams(
            dimension_semantics=("parallel",)),            # megacore split on v7x
    )(x2, w_slab, b_slab)
    return out


def init_params(key, embedding_size, hidden_size, head_size, n_heads):
    """Deterministic PyTorch-Linear-style init (uniform(-1/sqrt(fan_in), +))."""
    def lin(k, fan_in, fan_out):
        bound = 1.0 / (fan_in ** 0.5)
        kw, kb = jax.random.split(k)
        w = jax.random.uniform(kw, (fan_in, fan_out), jnp.float32, -bound, bound)
        b = jax.random.uniform(kb, (1, fan_out), jnp.float32, -bound, bound)
        return w, b

    ks = jax.random.split(key, 5)
    mw1, mb1 = lin(ks[0], embedding_size, hidden_size)
    mw2, mb2 = lin(ks[1], hidden_size, head_size * n_heads)
    aw1, ab1 = lin(ks[2], embedding_size, hidden_size)
    aw2, ab2 = lin(ks[3], hidden_size, hidden_size)
    aw3, ab3 = lin(ks[4], hidden_size, n_heads)
    return dict(mw1=mw1, mb1=mb1, mw2=mw2, mb2=mb2,
                aw1=aw1, ab1=ab1, aw2=aw2, ab2=ab2, aw3=aw3, ab3=ab3)


def reference_forward(x, p, head_size):
    """Plain-JAX f32 reference mirroring the torch forward, vmapped over batch."""
    def elu(v):
        return jnp.where(v > 0, v, jnp.exp(jnp.minimum(v, 0.0)) - 1.0)

    def single(xb):
        x_enc = elu(xb @ p["mw1"] + p["mb1"]) @ p["mw2"] + p["mb2"]
        a = elu(xb @ p["aw1"] + p["ab1"])
        a = elu(a @ p["aw2"] + p["ab2"])
        logits = a @ p["aw3"] + p["ab3"]
        attn = jax.nn.softmax(logits, axis=0)                       # softmax over N
        x_attn = jnp.repeat(attn, head_size, axis=-1)               # torch expand/reshape
        return jnp.sum(x_enc * x_attn, axis=0)

    return jax.vmap(single)(x)


if __name__ == "__main__":
    # Small, forward-consistent shapes; HD = head_size*n_heads = 128 (lane-dense).
    # B=64 with the default batch_tile gives a 2-step "parallel" grid (both v7x TCs fed).
    B, N = 64, 8
    EMB, HID, HEAD, NHEADS = 64, 64, 32, 4

    key = jax.random.PRNGKey(0)
    kx, kp = jax.random.split(key)
    x = jax.random.normal(kx, (B, N, EMB), dtype=jnp.float32)
    params = init_params(kp, EMB, HID, HEAD, NHEADS)

    out = embedding_combiner(x, params, head_size=HEAD, n_heads=NHEADS)
    out = jax.block_until_ready(out)

    ref = reference_forward(x, params, HEAD)
    assert out.shape == (B, HEAD * NHEADS)
    max_err = float(jnp.max(jnp.abs(out - ref)))
    # bf16 matmuls with f32 accumulation vs f32 reference -> loose-ish tolerance.
    assert jnp.allclose(out, ref, atol=2e-2, rtol=2e-2), ("max_abs_err", max_err)

    print("KERNEL_OK")
</pallas_src>

<mosaic_0001>
module attributes {stable_mosaic.version = 11 : i64} {
  func.func @kernel(%arg0: i32, %arg1: memref<256x64xf32, #tpu.memory_space<vmem>>, %arg2: memref<320x256xbf16, #tpu.memory_space<vmem>>, %arg3: memref<7x256xf32, #tpu.memory_space<vmem>>, %arg4: memref<32x128xf32, #tpu.memory_space<vmem>>) attributes {dimension_semantics = [#tpu.dimension_semantics<parallel>], iteration_bounds = array<i64: 2>, scalar_prefetch = 0 : i64, scratch_operands = 0 : i64, tpu.core_type = #tpu.core_type<tc>, window_params = [{transform_indices = @transform_0, window_bounds = array<i64: 256, 64>}, {pipeline_mode = #tpu.pipeline_mode<synchronous>, transform_indices = @transform_1, window_bounds = array<i64: 320, 256>}, {pipeline_mode = #tpu.pipeline_mode<synchronous>, transform_indices = @transform_2, window_bounds = array<i64: 7, 256>}, {transform_indices = @transform_3, window_bounds = array<i64: 32, 128>}]} {
    %c0 = arith.constant 0 : index
    %c0_0 = arith.constant 0 : index
    %0 = vector.load %arg1[%c0, %c0_0] : memref<256x64xf32, #tpu.memory_space<vmem>>, vector<256x64xf32>
    %1 = arith.truncf %0 : vector<256x64xf32> to vector<256x64xbf16>
    %c0_1 = arith.constant 0 : index
    %c0_2 = arith.constant 0 : index
    %2 = vector.load %arg2[%c0_1, %c0_2] : memref<320x256xbf16, #tpu.memory_space<vmem>>, vector<64x128xbf16>
    %c64 = arith.constant 64 : index
    %c0_3 = arith.constant 0 : index
    %3 = vector.load %arg2[%c64, %c0_3] : memref<320x256xbf16, #tpu.memory_space<vmem>>, vector<128x256xbf16>
    %c192 = arith.constant 192 : index
    %c0_4 = arith.constant 0 : index
    %4 = vector.load %arg2[%c192, %c0_4] : memref<320x256xbf16, #tpu.memory_space<vmem>>, vector<128x128xbf16>
    %c0_5 = arith.constant 0 : index
    %c0_6 = arith.constant 0 : index
    %5 = vector.load %arg3[%c0_5, %c0_6] : memref<7x256xf32, #tpu.memory_space<vmem>>, vector<1x128xf32>
    %c1 = arith.constant 1 : index
    %c0_7 = arith.constant 0 : index
    %6 = vector.load %arg3[%c1, %c0_7] : memref<7x256xf32, #tpu.memory_space<vmem>>, vector<1x256xf32>
    %c2 = arith.constant 2 : index
    %c0_8 = arith.constant 0 : index
    %7 = vector.load %arg3[%c2, %c0_8] : memref<7x256xf32, #tpu.memory_space<vmem>>, vector<1x128xf32>
    %c3 = arith.constant 3 : index
    %c0_9 = arith.constant 0 : index
    %8 = vector.load %arg3[%c3, %c0_9] : memref<7x256xf32, #tpu.memory_space<vmem>>, vector<4x128xf32>
    %cst = arith.constant dense<0.000000e+00> : vector<256x128xf32>
    %9 = tpu.matmul %1, %2, %cst {dimension_numbers = #tpu.dot_dimension_numbers<[1], [0], [0], [1], [0, 0, 1, 1], [], []>} : vector<256x64xbf16>, vector<64x128xbf16>, vector<256x128xf32> -> vector<256x128xf32>
    %10 = vector.broadcast %5 : vector<1x128xf32> to vector<256x128xf32>
    %11 = arith.addf %9, %10 : vector<256x128xf32>
    %cst_10 = arith.constant 0.000000e+00 : f32
    %12 = vector.broadcast %cst_10 : f32 to vector<256x128xf32>
    %13 = arith.cmpf ogt, %11, %12 : vector<256x128xf32>
    %14 = math.exp %11 : vector<256x128xf32>
    %cst_11 = arith.constant 1.000000e+00 : f32
    %15 = vector.broadcast %cst_11 : f32 to vector<256x128xf32>
    %16 = arith.subf %14, %15 : vector<256x128xf32>
    %17 = arith.select %13, %11, %16 : vector<256x128xi1>, vector<256x128xf32>
    %18 = arith.truncf %17 : vector<256x128xf32> to vector<256x128xbf16>
    %cst_12 = arith.constant dense<0.000000e+00> : vector<256x256xf32>
    %19 = tpu.matmul %18, %3, %cst_12 {dimension_numbers = #tpu.dot_dimension_numbers<[1], [0], [0], [1], [0, 0, 1, 1], [], []>} : vector<256x128xbf16>, vector<128x256xbf16>, vector<256x256xf32> -> vector<256x256xf32>
    %20 = vector.broadcast %6 : vector<1x256xf32> to vector<256x256xf32>
    %21 = arith.addf %19, %20 : vector<256x256xf32>
    %22 = vector.extract_strided_slice %21 {offsets = [0, 0], sizes = [256, 128], strides = [1, 1]} : vector<256x256xf32> to vector<256x128xf32>
    %23 = vector.extract_strided_slice %21 {offsets = [0, 128], sizes = [256, 128], strides = [1, 1]} : vector<256x256xf32> to vector<256x128xf32>
    %cst_13 = arith.constant 0.000000e+00 : f32
    %24 = vector.broadcast %cst_13 : f32 to vector<256x128xf32>
    %25 = arith.cmpf ogt, %23, %24 : vector<256x128xf32>
    %26 = math.exp %23 : vector<256x128xf32>
    %cst_14 = arith.constant 1.000000e+00 : f32
    %27 = vector.broadcast %cst_14 : f32 to vector<256x128xf32>
    %28 = arith.subf %26, %27 : vector<256x128xf32>
    %29 = arith.select %25, %23, %28 : vector<256x128xi1>, vector<256x128xf32>
    %30 = arith.truncf %29 : vector<256x128xf32> to vector<256x128xbf16>
    %cst_15 = arith.constant dense<0.000000e+00> : vector<256x128xf32>
    %31 = tpu.matmul %30, %4, %cst_15 {dimension_numbers = #tpu.dot_dimension_numbers<[1], [0], [0], [1], [0, 0, 1, 1], [], []>} : vector<256x128xbf16>, vector<128x128xbf16>, vector<256x128xf32> -> vector<256x128xf32>
    %32 = vector.broadcast %7 : vector<1x128xf32> to vector<256x128xf32>
    %33 = arith.addf %31, %32 : vector<256x128xf32>
    %34 = vector.extract_strided_slice %33 {offsets = [0, 0], sizes = [256, 4], strides = [1, 1]} : vector<256x128xf32> to vector<256x4xf32>
    %35 = vector.shape_cast %34 : vector<256x4xf32> to vector<32x8x4xf32>
    %cst_16 = arith.constant dense<0xFF800000> : vector<32x4xf32>
    %36 = vector.multi_reduction <maximumf>, %35, %cst_16 [1] : vector<32x8x4xf32> to vector<32x4xf32>
    %37 = vector.shape_cast %36 : vector<32x4xf32> to vector<32x1x4xf32>
    %38 = vector.broadcast %37 : vector<32x1x4xf32> to vector<32x8x4xf32>
    %39 = arith.subf %35, %38 : vector<32x8x4xf32>
    %40 = math.exp %39 : vector<32x8x4xf32>
    %cst_17 = arith.constant dense<0.000000e+00> : vector<32x4xf32>
    %41 = vector.multi_reduction <add>, %40, %cst_17 [1] : vector<32x8x4xf32> to vector<32x4xf32>
    %42 = vector.shape_cast %41 : vector<32x4xf32> to vector<32x1x4xf32>
    %43 = tpu.reciprocal %42 {approx = true} : vector<32x1x4xf32> -> vector<32x1x4xf32>
    %44 = vector.broadcast %43 : vector<32x1x4xf32> to vector<32x8x4xf32>
    %45 = arith.mulf %40, %44 : vector<32x8x4xf32>
    %46 = vector.shape_cast %45 : vector<32x8x4xf32> to vector<256x4xf32>
    %cst_18 = arith.constant dense<0.000000e+00> : vector<256x128xf32>
    %47 = tpu.matmul %46, %8, %cst_18 {dimension_numbers = #tpu.dot_dimension_numbers<[1], [0], [0], [1], [0, 0, 1, 1], [], []>} : vector<256x4xf32>, vector<4x128xf32>, vector<256x128xf32> -> vector<256x128xf32>
    %48 = arith.mulf %22, %47 : vector<256x128xf32>
    %49 = vector.shape_cast %48 : vector<256x128xf32> to vector<32x8x128xf32>
    %cst_19 = arith.constant dense<0.000000e+00> : vector<32x128xf32>
    %50 = vector.multi_reduction <add>, %49, %cst_19 [1] : vector<32x8x128xf32> to vector<32x128xf32>
    %c0_20 = arith.constant 0 : index
    %c0_21 = arith.constant 0 : index
    %51 = vector.load %arg4[%c0_20, %c0_21] : memref<32x128xf32, #tpu.memory_space<vmem>>, vector<32x128xf32>
    tpu.vector_store %arg4[%c0_20, %c0_21], %50 {strides = array<i32>} : memref<32x128xf32, #tpu.memory_space<vmem>>, vector<32x128xf32>,
    return
  }
  func.func @transform_0(%arg0: i32) -> (i32, i32) {
    %c0_i32 = arith.constant 0 : i32
    %c0_i32_0 = arith.constant 0 : i32
    return %arg0, %c0_i32 : i32, i32
  }
  func.func @transform_1(%arg0: i32) -> (i32, i32) {
    %c0_i32 = arith.constant 0 : i32
    %c0_i32_0 = arith.constant 0 : i32
    %c0_i32_1 = arith.constant 0 : i32
    return %c0_i32, %c0_i32_0 : i32, i32
  }
  func.func @transform_2(%arg0: i32) -> (i32, i32) {
    %c0_i32 = arith.constant 0 : i32
    %c0_i32_0 = arith.constant 0 : i32
    %c0_i32_1 = arith.constant 0 : i32
    return %c0_i32, %c0_i32_0 : i32, i32
  }
  func.func @transform_3(%arg0: i32) -> (i32, i32) {
    %c0_i32 = arith.constant 0 : i32
    %c0_i32_0 = arith.constant 0 : i32
    return %arg0, %c0_i32 : i32, i32
  }
}

</mosaic_0001>

<llo_original>
// kernel: tpu_custom_call.1
$region0: #{tpu_custom_call.1}
  #allocation0 [shape = 'u32[]', space=smem, size = 0x4, offset = 0x4, fixed_abs, tag = 'smem constant byte address 0x4 - core index']
  #allocation1 [shape = 'u32[144,128]{1,0:T(1,128)}', space=vmem, size = 0x12000, scoped, tag = 'internal scratch']
  %s0 = inlined_call_operand.vmem [shape: f32[512,64], index: 0, kind: input, shape index: {}]
  %s1 = inlined_call_operand.vmem [shape: bf16[320,256], index: 1, kind: input, shape index: {}]
  %s2 = inlined_call_operand.vmem [shape: f32[7,256], index: 2, kind: input, shape index: {}]
  %s3 = inlined_call_operand.hbm [shape: f32[64,128], index: 3, kind: output, shape index: {}]
  %s4 = sld [smem:[#allocation0]]
  $region45: #{tpu_custom_call.1} parent=0
    _
  %s6 = ssub.s32 1, %s4
  %s7 = scalar_select 0, %s6, %s4
  $region1: #{tpu_custom_call.1} parent=0
    #allocation2 [shape = 'u8[32768]{0}', space=vmem, size = 0x8000, scoped, tag = 'output window, operand 0']
    #allocation3 [shape = 's32[2]{0}', space=sflag, size = 0x8, scoped, tag = 'scoped memory for tpu_custom_call.1']
    %8 = vsyncpa [#allocation3], 0
    %s9 = scalar_lea.sflag [#allocation3], 1
    %10 = vsyncpa %s9, 0
    loop: start=0, step=1, limit=4
    $region2: #{tpu_custom_call.1} parent=1 // loop_pre_header
      _
    $region3: #{tpu_custom_call.1} parent=1 // loop_header
      %s12 = sphi 0, %s16
      %p13 = scmp.ge.s32.totalorder %s12, 4
      %s22 = sphi 0, %s24
      %s25 = sphi 0, %s22
      %s26 = sphi 0, %s25
      %s42 = sphi 0, %s26
      %s46 = sphi 0, %s46
      %s48 = sphi 0, %s46
      %s49 = sphi 0, %s48
      %s63 = sphi 0, %s49
      %s67 = sphi 0, %s67
      %s69 = sphi 0, %s67
      %s70 = sphi 0, %s69
      %s84 = sphi 0, %s70
      %s90 = sphi 0, %s92
      %s93 = sphi 0, %s90
      %s94 = sphi 0, %s93
      %s110 = sphi 0, %s94
    $region4: #{tpu_custom_call.1} parent=1 // loop_header_branch
      %15 = sbr.rel (%p13) target = $region8
    $region5: #{tpu_custom_call.1} parent=1 // loop_body
      %s17 = ssub.s32 %s12, 1
      %s18 = ssub.s32 %s12, 2
      %s19 = sadd.s32 %s12, 1
      %s20 = ssub.s32 %s12, %s19
      %p21 = scmp.eq.s32.totalorder %s20, 0
      %s23 = sadd.s32 %s22, 1
      %s24 = scalar_select %p21, %s22, %s23
      %p27 = pneg %p21
      %p28 = scmp.eq.s32.totalorder %s12, 1
      %p29 = por %p27, %p28
      %p30 = scmp.ne.s32.totalorder %s22, %s25
      %p31 = scmp.eq.s32.totalorder %s12, 0
      %p32 = por %p30, %p31
      %p33 = scmp.ne.s32.totalorder %s22, %s25
      %p34 = scmp.eq.s32.totalorder %s17, 1
      %p35 = por %p33, %p34
      %p36 = scmp.ne.s32.totalorder %s25, %s26
      %p37 = scmp.eq.s32.totalorder %s17, 0
      %p38 = por %p36, %p37
      %p39 = scmp.ne.s32.totalorder %s25, %s26
      %p40 = scmp.eq.s32.totalorder %s18, 1
      %p41 = por %p39, %p40
      %p43 = scmp.ne.s32.totalorder %s26, %s42
      %p44 = scmp.eq.s32.totalorder %s18, 0
      %p45 = por %p43, %p44
      %s47 = sadd.s32 %s46, 1
      %p50 = scmp.eq.s32.totalorder %s12, 1
      %p51 = scmp.ne.s32.totalorder %s46, %s48
      %p52 = scmp.eq.s32.totalorder %s12, 0
      %p53 = por %p51, %p52
      %p54 = scmp.ne.s32.totalorder %s46, %s48
      %p55 = scmp.eq.s32.totalorder %s17, 1
      %p56 = por %p54, %p55
      %p57 = scmp.ne.s32.totalorder %s48, %s49
      %p58 = scmp.eq.s32.totalorder %s17, 0
      %p59 = por %p57, %p58
      %p60 = scmp.ne.s32.totalorder %s48, %s49
      %p61 = scmp.eq.s32.totalorder %s18, 1
      %p62 = por %p60, %p61
      %p64 = scmp.ne.s32.totalorder %s49, %s63
      %p65 = scmp.eq.s32.totalorder %s18, 0
      %p66 = por %p64, %p65
      %s68 = sadd.s32 %s67, 1
      %p71 = scmp.eq.s32.totalorder %s12, 1
      %p72 = scmp.ne.s32.totalorder %s67, %s69
      %p73 = scmp.eq.s32.totalorder %s12, 0
      %p74 = por %p72, %p73
      %p75 = scmp.ne.s32.totalorder %s67, %s69
      %p76 = scmp.eq.s32.totalorder %s17, 1
      %p77 = por %p75, %p76
      %p78 = scmp.ne.s32.totalorder %s69, %s70
      %p79 = scmp.eq.s32.totalorder %s17, 0
      %p80 = por %p78, %p79
      %p81 = scmp.ne.s32.totalorder %s69, %s70
      %p82 = scmp.eq.s32.totalorder %s18, 1
      %p83 = por %p81, %p82
      %p85 = scmp.ne.s32.totalorder %s70, %s84
      %p86 = scmp.eq.s32.totalorder %s18, 0
      %p87 = por %p85, %p86
      %s88 = ssub.s32 %s12, %s19
      %p89 = scmp.eq.s32.totalorder %s88, 0
      %s91 = sadd.s32 %s90, 1
      %s92 = scalar_select %p89, %s90, %s91
      %p95 = pneg %p89
      %p96 = scmp.eq.s32.totalorder %s12, 1
      %p97 = por %p95, %p96
      %p98 = scmp.ne.s32.totalorder %s90, %s93
      %p99 = scmp.eq.s32.totalorder %s12, 0
      %p100 = por %p98, %p99
      %p101 = scmp.ne.s32.totalorder %s90, %s93
      %p102 = scmp.eq.s32.totalorder %s17, 1
      %p103 = por %p101, %p102
      %p104 = scmp.ne.s32.totalorder %s93, %s94
      %p105 = scmp.eq.s32.totalorder %s17, 0
      %p106 = por %p104, %p105
      %p107 = scmp.ne.s32.totalorder %s93, %s94
      %p108 = scmp.eq.s32.totalorder %s18, 1
      %p109 = por %p107, %p108
      %p111 = scmp.ne.s32.totalorder %s94, %s110
      %p112 = scmp.eq.s32.totalorder %s18, 0
      %p113 = por %p111, %p112
      %p114 = scmp.le.s32.totalorder 1, %s12
      %p115 = scmp.lt.s32.totalorder %s12, 3
      %p116 = pnand %p114, %p115
      %p117 = pneg %p116
      // Predicated region
      $region9: #{tpu_custom_call.1} parent=5 // pred_check
        _
      $region10: #{tpu_custom_call.1} parent=5 // pred_check_branch
        %119 = sbr.rel (%p116) target = $region12
      $region11: #{tpu_custom_call.1} parent=5 // pred_region
        %s120 = ssub.s32 %s12, 1
        // Predicated region
        $region13: #{tpu_custom_call.1} parent=11 // pred_check
          %p121 = pneg %p59
        $region14: #{tpu_custom_call.1} parent=11 // pred_check_branch
          %123 = sbr.rel (%p121) target = $region16
        $region15: #{tpu_custom_call.1} parent=11 // pred_region
          _
        $region16: #{tpu_custom_call.1} parent=11 // pred_fallthru
          _
        // Predicated region
        $region17: #{tpu_custom_call.1} parent=11 // pred_check
          %p124 = pneg %p80
        $region18: #{tpu_custom_call.1} parent=11 // pred_check_branch
          %126 = sbr.rel (%p124) target = $region20
        $region19: #{tpu_custom_call.1} parent=11 // pred_region
          _
        $region20: #{tpu_custom_call.1} parent=11 // pred_fallthru
          _
      $region12: #{tpu_custom_call.1} parent=5 // pred_fallthru
        _
      %p127 = scmp.lt.s32.totalorder %s12, 2
      // Predicated region
      $region21: #{tpu_custom_call.1} parent=5 // pred_check
        %p128 = pneg %p127
      $region22: #{tpu_custom_call.1} parent=5 // pred_check_branch
        %130 = sbr.rel (%p128) target = $region24
      $region23: #{tpu_custom_call.1} parent=5 // pred_region
        // Predicated region
        $region25: #{tpu_custom_call.1} parent=23 // pred_check
          %p131 = pneg %p32
        $region26: #{tpu_custom_call.1} parent=23 // pred_check_branch
          %133 = sbr.rel (%p131) target = $region28
        $region27: #{tpu_custom_call.1} parent=23 // pred_region
          %s134 = smul.u32 32, %s12
          %p135 = scmp.lt.s32.totalorder %s134, 63
          %s136 = scalar_select %p135, %s134, 63
          %s137 = smul.addr %s136, 8
          %s138 = scalar_lea.vmem %s0, %s137
          %s139 = smul.u32 32, %s12
        $region28: #{tpu_custom_call.1} parent=23 // pred_fallthru
          _
      $region24: #{tpu_custom_call.1} parent=5 // pred_fallthru
        _
      %p140 = scmp.le.s32.totalorder 1, %s12
      %p141 = scmp.lt.s32.totalorder %s12, 3
      %p142 = pnand %p140, %p141
      %p143 = pneg %p142
      // Predicated region
      $region29: #{tpu_custom_call.1} parent=5 // pred_check
        _
      $region30: #{tpu_custom_call.1} parent=5 // pred_check_branch
        %145 = sbr.rel (%p142) target = $region32
      $region31: #{tpu_custom_call.1} parent=5 // pred_region
        %s146 = ssub.s32 %s12, 1
        %s147 = smul.u32 32, %s17
        %p148 = scmp.lt.s32.totalorder %s147, 63
        %s149 = scalar_select %p148, %s147, 63
        %s150 = smul.addr %s149, 8
        %s151 = scalar_lea.vmem %s0, %s150
        %p152 = pneg %p38
        %p153 = pneg %p35
        %p154 = pneg %p59
        %p155 = pneg %p56
        %p156 = pneg %p80
        %p157 = pneg %p77
        %p158 = pneg %p106
        %p159 = pneg %p103
        %s160 = sand.u32 %s93, 1
        %s161 = scalar_lea.sflag [#allocation3], %s160
        %s162 = sand.u32 %s93, 1
        %s163 = smul.addr %s162, 32
        %s164 = scalar_lea.vmem [#allocation2], %s163
        %s165 = smul.u32 32, %s17
        %p166 = scmp.lt.s32.totalorder %s165, 63
        %s167 = scalar_select %p166, %s165, 63
        %s168 = smul.addr %s167, 8
        %s169 = scalar_lea.vmem %s0, %s168
        %s170 = smul.u32 32, %s17
        %s171 = smul.u32 4, %s17
        %v173 = vld [vmem:[%s169] sm:$0xff]
        %v174 = vld [vmem:[%s169 + $0x8] sm:$0xff]
        %v175 = vld [vmem:[%s169 + $0x10] sm:$0xff]
        %v176 = vld [vmem:[%s169 + $0x18] sm:$0xff]
        %v177 = vld [vmem:[%s169 + $0x20] sm:$0xff]
        %v178 = vld [vmem:[%s169 + $0x28] sm:$0xff]
        %v179 = vld [vmem:[%s169 + $0x30] sm:$0xff]
        %v180 = vld [vmem:[%s169 + $0x38] sm:$0xff]
        %v181 = vld [vmem:[%s169 + $0x40] sm:$0xff]
        %v182 = vld [vmem:[%s169 + $0x48] sm:$0xff]
        %v183 = vld [vmem:[%s169 + $0x50] sm:$0xff]
        %v184 = vld [vmem:[%s169 + $0x58] sm:$0xff]
        %v185 = vld [vmem:[%s169 + $0x60] sm:$0xff]
        %v186 = vld [vmem:[%s169 + $0x68] sm:$0xff]
        %v187 = vld [vmem:[%s169 + $0x70] sm:$0xff]
        %v188 = vld [vmem:[%s169 + $0x78] sm:$0xff]
        %v189 = vld [vmem:[%s169 + $0x80] sm:$0xff]
        %v190 = vld [vmem:[%s169 + $0x88] sm:$0xff]
        %v191 = vld [vmem:[%s169 + $0x90] sm:$0xff]
        %v192 = vld [vmem:[%s169 + $0x98] sm:$0xff]
        %v193 = vld [vmem:[%s169 + $0xa0] sm:$0xff]
        %v194 = vld [vmem:[%s169 + $0xa8] sm:$0xff]
        %v195 = vld [vmem:[%s169 + $0xb0] sm:$0xff]
        %v196 = vld [vmem:[%s169 + $0xb8] sm:$0xff]
        %v197 = vld [vmem:[%s169 + $0xc0] sm:$0xff]
        %v198 = vld [vmem:[%s169 + $0xc8] sm:$0xff]
        %v199 = vld [vmem:[%s169 + $0xd0] sm:$0xff]
        %v200 = vld [vmem:[%s169 + $0xd8] sm:$0xff]
        %v201 = vld [vmem:[%s169 + $0xe0] sm:$0xff]
        %v202 = vld [vmem:[%s169 + $0xe8] sm:$0xff]
        %v203 = vld [vmem:[%s169 + $0xf0] sm:$0xff]
        %v204 = vld [vmem:[%s169 + $0xf8] sm:$0xff]
        %v205 = vpack.c.bf16 %v174, %v173
        %v206 = vpack.c.bf16 %v176, %v175
        %v207 = vpack.c.bf16 %v178, %v177
        %v208 = vpack.c.bf16 %v180, %v179
        %v209 = vpack.c.bf16 %v182, %v181
        %v210 = vpack.c.bf16 %v184, %v183
        %v211 = vpack.c.bf16 %v186, %v185
        %v212 = vpack.c.bf16 %v188, %v187
        %v213 = vpack.c.bf16 %v190, %v189
        %v214 = vpack.c.bf16 %v192, %v191
        %v215 = vpack.c.bf16 %v194, %v193
        %v216 = vpack.c.bf16 %v196, %v195
        %v217 = vpack.c.bf16 %v198, %v197
        %v218 = vpack.c.bf16 %v200, %v199
        %v219 = vpack.c.bf16 %v202, %v201
        %v220 = vpack.c.bf16 %v204, %v203
        %v221 = vld [vmem:[%s1] sm:$0xf]
        %v222 = vld [vmem:[%s1 + $0x8] sm:$0xf]
        %v223 = vld [vmem:[%s1 + $0x10] sm:$0xf]
        %v224 = vld [vmem:[%s1 + $0x18] sm:$0xf]
        %v225 = vld [vmem:[%s1 + $0x20] sm:$0xf]
        %v226 = vld [vmem:[%s1 + $0x28] sm:$0xf]
        %v227 = vld [vmem:[%s1 + $0x30] sm:$0xf]
        %v228 = vld [vmem:[%s1 + $0x38] sm:$0xf]
        %v229 = vld [vmem:[%s1 + $0x40] sm:$0xff]
        %v230 = vld [vmem:[%s1 + $0x48] sm:$0xff]
        %v231 = vld [vmem:[%s1 + $0x50] sm:$0xff]
        %v232 = vld [vmem:[%s1 + $0x58] sm:$0xff]
        %v233 = vld [vmem:[%s1 + $0x60] sm:$0xff]
        %v234 = vld [vmem:[%s1 + $0x68] sm:$0xff]
        %v235 = vld [vmem:[%s1 + $0x70] sm:$0xff]
        %v236 = vld [vmem:[%s1 + $0x78] sm:$0xff]
        %v237 = vld [vmem:[%s1 + $0x80] sm:$0xff]
        %v238 = vld [vmem:[%s1 + $0x88] sm:$0xff]
        %v239 = vld [vmem:[%s1 + $0x90] sm:$0xff]
        %v240 = vld [vmem:[%s1 + $0x98] sm:$0xff]
        %v241 = vld [vmem:[%s1 + $0xa0] sm:$0xff]
        %v242 = vld [vmem:[%s1 + $0xa8] sm:$0xff]
        %v243 = vld [vmem:[%s1 + $0xb0] sm:$0xff]
        %v244 = vld [vmem:[%s1 + $0xb8] sm:$0xff]
        %v245 = vld [vmem:[%s1 + $0xc0] sm:$0xf]
        %v246 = vld [vmem:[%s1 + $0xc8] sm:$0xf]
        %v247 = vld [vmem:[%s1 + $0xd0] sm:$0xf]
        %v248 = vld [vmem:[%s1 + $0xd8] sm:$0xf]
        %v249 = vld [vmem:[%s1 + $0xe0] sm:$0xf]
        %v250 = vld [vmem:[%s1 + $0xe8] sm:$0xf]
        %v251 = vld [vmem:[%s1 + $0xf0] sm:$0xf]
        %v252 = vld [vmem:[%s1 + $0xf8] sm:$0xf]
        %v253 = vld [vmem:[%s1 + $0x100] sm:$0xf]
        %v254 = vld [vmem:[%s1 + $0x108] sm:$0xf]
        %v255 = vld [vmem:[%s1 + $0x110] sm:$0xf]
        %v256 = vld [vmem:[%s1 + $0x118] sm:$0xf]
        %v257 = vld [vmem:[%s1 + $0x120] sm:$0xf]
        %v258 = vld [vmem:[%s1 + $0x128] sm:$0xf]
        %v259 = vld [vmem:[%s1 + $0x130] sm:$0xf]
        %v260 = vld [vmem:[%s1 + $0x138] sm:$0xf]
        %v261 = vld [vmem:[%s2] ss:$0 sm:$0xff]
        %s262 = scalar_lea.vmem %s2, 1
        %v263 = vld [vmem:[%s262] ss:$8 sm:$0x3]
        %v264 = vld [vmem:[%s2 + $0x2] ss:$0 sm:$0xff]
        %v265 = vld [vmem:[%s2] sm:$0x78]
        %v274 = vunpack.c.l.b16 %v221
        %v275 = vunpack.c.l.b16 %v222
        %v276 = vunpack.c.l.b16 %v223
        %v277 = vunpack.c.l.b16 %v224
        %v278 = vunpack.c.l.b16 %v225
        %v279 = vunpack.c.l.b16 %v226
        %v280 = vunpack.c.l.b16 %v227
        %v281 = vunpack.c.l.b16 %v228
        %v282 = vpack.c.b16 %v275, %v274
        %v283 = vpack.c.b16 %v277, %v276
        %v284 = vpack.c.b16 %v279, %v278
        %v285 = vpack.c.b16 %v281, %v280
        %vm290 = vcmask 523264
        %v292 = vsel %vm290, %v205, 0
        %v295 = vsel %vm290, %v206, 0
        %v298 = vsel %vm290, %v207, 0
        %v301 = vsel %vm290, %v208, 0
        %v304 = vsel %vm290, %v209, 0
        %v307 = vsel %vm290, %v210, 0
        %v310 = vsel %vm290, %v211, 0
        %v313 = vsel %vm290, %v212, 0
        %v316 = vsel %vm290, %v213, 0
        %v319 = vsel %vm290, %v214, 0
        %v322 = vsel %vm290, %v215, 0
        %v325 = vsel %vm290, %v216, 0
        %v328 = vsel %vm290, %v217, 0
        %v331 = vsel %vm290, %v218, 0
        %v334 = vsel %vm290, %v219, 0
        %v337 = vsel %vm290, %v220, 0
        %339 = vmatprep.subr.bf16.mxu0 0
        %340 = vmatpush1.bf16.msra.mxu0 0
        %341 = vmatprep.subr.bf16.mxu0 0
        %342 = vmatpush1.bf16.msra.mxu0 0
        %343 = vmatprep.subr.bf16.mxu0 0
        %344 = vmatpush1.bf16.msra.mxu0 0
        %345 = vmatprep.subr.bf16.mxu0 0
        %346 = vmatpush1.bf16.msra.mxu0 0
        %347 = vmatprep.subr.bf16.mxu0 0
        %348 = vmatpush1.bf16.msra.mxu0 %v285
        %349 = vmatprep.subr.bf16.mxu0 0
        %350 = vmatpush1.bf16.msra.mxu0 %v284
        %351 = vmatprep.subr.bf16.mxu0 0
        %352 = vmatpush1.bf16.msra.mxu0 %v283
        %353 = vmatprep.subr.bf16.mxu0 0
        %354 = vmatpush1.bf16.msra.mxu0 %v282
        %355 = vmatprep.subr.bf16.mxu0 0
        %356 = vmatpush2.bf16.msra.mxu0 0
        %357 = vmatprep.subr.bf16.mxu0 0
        %358 = vmatpush2.bf16.msra.mxu0 0
        %359 = vmatprep.subr.bf16.mxu0 0
        %360 = vmatpush2.bf16.msra.mxu0 0
        %361 = vmatprep.subr.bf16.mxu0 0
        %362 = vmatpush2.bf16.msra.mxu0 0
        %363 = vmatprep.subr.bf16.mxu0 0
        %364 = vmatpush2.bf16.msra.mxu0 0
        %365 = vmatprep.subr.bf16.mxu0 0
        %366 = vmatpush2.bf16.msra.mxu0 0
        %367 = vmatprep.subr.bf16.mxu0 0
        %368 = vmatpush2.bf16.msra.mxu0 0
        %369 = vmatprep.subr.bf16.mxu0 0
        %370 = vmatpush2.bf16.msra.mxu0 0
        %371 = vmatprep.mubr.bf16.mxu0 0
        %372 = vmatmul.mubr.bf16.gmra.mxu0 %v292
        %v373 = vpop.f32.mrf.mxu0
        %v374 = vadd.f32 %v261, %v373
        %v375 = vpop.f32.mrf.mxu0
        %v376 = vpop.f32.mrf.mxu0
        %v377 = vadd.f32 %v261, %v376
        %v378 = vpop.f32.mrf.mxu0
        %379 = vmatprep.mubr.bf16.mxu0 0
        %380 = vmatmul.mubr.bf16.gmra.mxu0 %v295
        %v381 = vpop.f32.mrf.mxu0
        %v382 = vadd.f32 %v261, %v381
        %v383 = vpop.f32.mrf.mxu0
        %v384 = vpop.f32.mrf.mxu0
        %v385 = vadd.f32 %v261, %v384
        %v386 = vpop.f32.mrf.mxu0
        %387 = vmatprep.mubr.bf16.mxu0 0
        %388 = vmatmul.mubr.bf16.gmra.mxu0 %v298
        %v389 = vpop.f32.mrf.mxu0
        %v390 = vadd.f32 %v261, %v389
        %v391 = vpop.f32.mrf.mxu0
        %v392 = vpop.f32.mrf.mxu0
        %v393 = vadd.f32 %v261, %v392
        %v394 = vpop.f32.mrf.mxu0
        %395 = vmatprep.mubr.bf16.mxu0 0
        %396 = vmatmul.mubr.bf16.gmra.mxu0 %v301
        %v397 = vpop.f32.mrf.mxu0
        %v398 = vadd.f32 %v261, %v397
        %v399 = vpop.f32.mrf.mxu0
        %v400 = vpop.f32.mrf.mxu0
        %v401 = vadd.f32 %v261, %v400
        %v402 = vpop.f32.mrf.mxu0
        %403 = vmatprep.mubr.bf16.mxu0 0
        %404 = vmatmul.mubr.bf16.gmra.mxu0 %v304
        %v405 = vpop.f32.mrf.mxu0
        %v406 = vadd.f32 %v261, %v405
        %v407 = vpop.f32.mrf.mxu0
        %v408 = vpop.f32.mrf.mxu0
        %v409 = vadd.f32 %v261, %v408
        %v410 = vpop.f32.mrf.mxu0
        %411 = vmatprep.mubr.bf16.mxu0 0
        %412 = vmatmul.mubr.bf16.gmra.mxu0 %v307
        %v413 = vpop.f32.mrf.mxu0
        %v414 = vadd.f32 %v261, %v413
        %v415 = vpop.f32.mrf.mxu0
        %v416 = vpop.f32.mrf.mxu0
        %v417 = vadd.f32 %v261, %v416
        %v418 = vpop.f32.mrf.mxu0
        %419 = vmatprep.mubr.bf16.mxu0 0
        %420 = vmatmul.mubr.bf16.gmra.mxu0 %v310
        %v421 = vpop.f32.mrf.mxu0
        %v422 = vadd.f32 %v261, %v421
        %v423 = vpop.f32.mrf.mxu0
        %v424 = vpop.f32.mrf.mxu0
        %v425 = vadd.f32 %v261, %v424
        %v426 = vpop.f32.mrf.mxu0
        %427 = vmatprep.mubr.bf16.mxu0 0
        %428 = vmatmul.mubr.bf16.gmra.mxu0 %v313
        %v429 = vpop.f32.mrf.mxu0
        %v430 = vadd.f32 %v261, %v429
        %v431 = vpop.f32.mrf.mxu0
        %v432 = vpop.f32.mrf.mxu0
        %v433 = vadd.f32 %v261, %v432
        %v434 = vpop.f32.mrf.mxu0
        %435 = vmatprep.mubr.bf16.mxu0 0
        %436 = vmatmul.mubr.bf16.gmra.mxu0 %v316
        %v437 = vpop.f32.mrf.mxu0
        %v438 = vadd.f32 %v261, %v437
        %v439 = vpop.f32.mrf.mxu0
        %v440 = vpop.f32.mrf.mxu0
        %v441 = vadd.f32 %v261, %v440
        %v442 = vpop.f32.mrf.mxu0
        %443 = vmatprep.mubr.bf16.mxu0 0
        %444 = vmatmul.mubr.bf16.gmra.mxu0 %v319
        %v445 = vpop.f32.mrf.mxu0
        %v446 = vadd.f32 %v261, %v445
        %v447 = vpop.f32.mrf.mxu0
        %v448 = vpop.f32.mrf.mxu0
        %v449 = vadd.f32 %v261, %v448
        %v450 = vpop.f32.mrf.mxu0
        %451 = vmatprep.mubr.bf16.mxu0 0
        %452 = vmatmul.mubr.bf16.gmra.mxu0 %v322
        %v453 = vpop.f32.mrf.mxu0
        %v454 = vadd.f32 %v261, %v453
        %v455 = vpop.f32.mrf.mxu0
        %v456 = vpop.f32.mrf.mxu0
        %v457 = vadd.f32 %v261, %v456
        %v458 = vpop.f32.mrf.mxu0
        %459 = vmatprep.mubr.bf16.mxu0 0
        %460 = vmatmul.mubr.bf16.gmra.mxu0 %v325
        %v461 = vpop.f32.mrf.mxu0
        %v462 = vadd.f32 %v261, %v461
        %v463 = vpop.f32.mrf.mxu0
        %v464 = vpop.f32.mrf.mxu0
        %v465 = vadd.f32 %v261, %v464
        %v466 = vpop.f32.mrf.mxu0
        %467 = vmatprep.mubr.bf16.mxu0 0
        %468 = vmatmul.mubr.bf16.gmra.mxu0 %v328
        %v469 = vpop.f32.mrf.mxu0
        %v470 = vadd.f32 %v261, %v469
        %v471 = vpop.f32.mrf.mxu0
        %v472 = vpop.f32.mrf.mxu0
        %v473 = vadd.f32 %v261, %v472
        %v474 = vpop.f32.mrf.mxu0
        %475 = vmatprep.mubr.bf16.mxu0 0
        %476 = vmatmul.mubr.bf16.gmra.mxu0 %v331
        %v477 = vpop.f32.mrf.mxu0
        %v478 = vadd.f32 %v261, %v477
        %v479 = vpop.f32.mrf.mxu0
        %v480 = vpop.f32.mrf.mxu0
        %v481 = vadd.f32 %v261, %v480
        %v482 = vpop.f32.mrf.mxu0
        %483 = vmatprep.mubr.bf16.mxu0 0
        %484 = vmatmul.mubr.bf16.gmra.mxu0 %v334
        %v485 = vpop.f32.mrf.mxu0
        %v486 = vadd.f32 %v261, %v485
        %v487 = vpop.f32.mrf.mxu0
        %v488 = vpop.f32.mrf.mxu0
        %v489 = vadd.f32 %v261, %v488
        %v490 = vpop.f32.mrf.mxu0
        %491 = vmatprep.mubr.bf16.mxu0 0
        %492 = vmatmul.mubr.bf16.gmra.mxu0 %v337
        %v493 = vpop.f32.mrf.mxu0
        %v494 = vadd.f32 %v261, %v493
        %v495 = vpop.f32.mrf.mxu0
        %v496 = vpop.f32.mrf.mxu0
        %v497 = vadd.f32 %v261, %v496
        %v498 = vpop.f32.mrf.mxu0
        %499 = vdwg.mxu0
        %vm500 = vcmp.gt.f32.partialorder %v374, 0.0
        %vm501 = vcmp.gt.f32.partialorder %v377, 0.0
        %vm502 = vcmp.gt.f32.partialorder %v382, 0.0
        %vm503 = vcmp.gt.f32.partialorder %v385, 0.0
        %vm504 = vcmp.gt.f32.partialorder %v390, 0.0
        %vm505 = vcmp.gt.f32.partialorder %v393, 0.0
        %vm506 = vcmp.gt.f32.partialorder %v398, 0.0
        %vm507 = vcmp.gt.f32.partialorder %v401, 0.0
        %vm508 = vcmp.gt.f32.partialorder %v406, 0.0
        %vm509 = vcmp.gt.f32.partialorder %v409, 0.0
        %vm510 = vcmp.gt.f32.partialorder %v414, 0.0
        %vm511 = vcmp.gt.f32.partialorder %v417, 0.0
        %vm512 = vcmp.gt.f32.partialorder %v422, 0.0
        %vm513 = vcmp.gt.f32.partialorder %v425, 0.0
        %vm514 = vcmp.gt.f32.partialorder %v430, 0.0
        %vm515 = vcmp.gt.f32.partialorder %v433, 0.0
        %vm516 = vcmp.gt.f32.partialorder %v438, 0.0
        %vm517 = vcmp.gt.f32.partialorder %v441, 0.0
        %vm518 = vcmp.gt.f32.partialorder %v446, 0.0
        %vm519 = vcmp.gt.f32.partialorder %v449, 0.0
        %vm520 = vcmp.gt.f32.partialorder %v454, 0.0
        %vm521 = vcmp.gt.f32.partialorder %v457, 0.0
        %vm522 = vcmp.gt.f32.partialorder %v462, 0.0
        %vm523 = vcmp.gt.f32.partialorder %v465, 0.0
        %vm524 = vcmp.gt.f32.partialorder %v470, 0.0
        %vm525 = vcmp.gt.f32.partialorder %v473, 0.0
        %vm526 = vcmp.gt.f32.partialorder %v478, 0.0
        %vm527 = vcmp.gt.f32.partialorder %v481, 0.0
        %vm528 = vcmp.gt.f32.partialorder %v486, 0.0
        %vm529 = vcmp.gt.f32.partialorder %v489, 0.0
        %vm530 = vcmp.gt.f32.partialorder %v494, 0.0
        %vm531 = vcmp.gt.f32.partialorder %v497, 0.0
        %v532 = vmul.f32 %v374, 1.442695
        %v533 = vpow.pop %v532
        %v534 = vmul.f32 %v377, 1.442695
        %v535 = vpow.pop %v534
        %v536 = vmul.f32 %v382, 1.442695
        %v537 = vpow.pop %v536
        %v538 = vmul.f32 %v385, 1.442695
        %v539 = vpow.pop %v538
        %v540 = vmul.f32 %v390, 1.442695
        %v541 = vpow.pop %v540
        %v542 = vmul.f32 %v393, 1.442695
        %v543 = vpow.pop %v542
        %v544 = vmul.f32 %v398, 1.442695
        %v545 = vpow.pop %v544
        %v546 = vmul.f32 %v401, 1.442695
        %v547 = vpow.pop %v546
        %v548 = vmul.f32 %v406, 1.442695
        %v549 = vpow.pop %v548
        %v550 = vmul.f32 %v409, 1.442695
        %v551 = vpow.pop %v550
        %v552 = vmul.f32 %v414, 1.442695
        %v553 = vpow.pop %v552
        %v554 = vmul.f32 %v417, 1.442695
        %v555 = vpow.pop %v554
        %v556 = vmul.f32 %v422, 1.442695
        %v557 = vpow.pop %v556
        %v558 = vmul.f32 %v425, 1.442695
        %v559 = vpow.pop %v558
        %v560 = vmul.f32 %v430, 1.442695
        %v561 = vpow.pop %v560
        %v562 = vmul.f32 %v433, 1.442695
        %v563 = vpow.pop %v562
        %v564 = vmul.f32 %v438, 1.442695
        %v565 = vpow.pop %v564
        %v566 = vmul.f32 %v441, 1.442695
        %v567 = vpow.pop %v566
        %v568 = vmul.f32 %v446, 1.442695
        %v569 = vpow.pop %v568
        %v570 = vmul.f32 %v449, 1.442695
        %v571 = vpow.pop %v570
        %v572 = vmul.f32 %v454, 1.442695
        %v573 = vpow.pop %v572
        %v574 = vmul.f32 %v457, 1.442695
        %v575 = vpow.pop %v574
        %v576 = vmul.f32 %v462, 1.442695
        %v577 = vpow.pop %v576
        %v578 = vmul.f32 %v465, 1.442695
        %v579 = vpow.pop %v578
        %v580 = vmul.f32 %v470, 1.442695
        %v581 = vpow.pop %v580
        %v582 = vmul.f32 %v473, 1.442695
        %v583 = vpow.pop %v582
        %v584 = vmul.f32 %v478, 1.442695
        %v585 = vpow.pop %v584
        %v586 = vmul.f32 %v481, 1.442695
        %v587 = vpow.pop %v586
        %v588 = vmul.f32 %v486, 1.442695
        %v589 = vpow.pop %v588
        %v590 = vmul.f32 %v489, 1.442695
        %v591 = vpow.pop %v590
        %v592 = vmul.f32 %v494, 1.442695
        %v593 = vpow.pop %v592
        %v594 = vmul.f32 %v497, 1.442695
        %v595 = vpow.pop %v594
        %v596 = vsub.f32 %v533, 1.0
        %v597 = vsub.f32 %v535, 1.0
        %v598 = vsub.f32 %v537, 1.0
        %v599 = vsub.f32 %v539, 1.0
        %v600 = vsub.f32 %v541, 1.0
        %v601 = vsub.f32 %v543, 1.0
        %v602 = vsub.f32 %v545, 1.0
        %v603 = vsub.f32 %v547, 1.0
        %v604 = vsub.f32 %v549, 1.0
        %v605 = vsub.f32 %v551, 1.0
        %v606 = vsub.f32 %v553, 1.0
        %v607 = vsub.f32 %v555, 1.0
        %v608 = vsub.f32 %v557, 1.0
        %v609 = vsub.f32 %v559, 1.0
        %v610 = vsub.f32 %v561, 1.0
        %v611 = vsub.f32 %v563, 1.0
        %v612 = vsub.f32 %v565, 1.0
        %v613 = vsub.f32 %v567, 1.0
        %v614 = vsub.f32 %v569, 1.0
        %v615 = vsub.f32 %v571, 1.0
        %v616 = vsub.f32 %v573, 1.0
        %v617 = vsub.f32 %v575, 1.0
        %v618 = vsub.f32 %v577, 1.0
        %v619 = vsub.f32 %v579, 1.0
        %v620 = vsub.f32 %v581, 1.0
        %v621 = vsub.f32 %v583, 1.0
        %v622 = vsub.f32 %v585, 1.0
        %v623 = vsub.f32 %v587, 1.0
        %v624 = vsub.f32 %v589, 1.0
        %v625 = vsub.f32 %v591, 1.0
        %v626 = vsub.f32 %v593, 1.0
        %v627 = vsub.f32 %v595, 1.0
        %v628 = vsel %vm500, %v374, %v596
        %v629 = vsel %vm501, %v377, %v597
        %v630 = vsel %vm502, %v382, %v598
        %v631 = vsel %vm503, %v385, %v599
        %v632 = vsel %vm504, %v390, %v600
        %v633 = vsel %vm505, %v393, %v601
        %v634 = vsel %vm506, %v398, %v602
        %v635 = vsel %vm507, %v401, %v603
        %v636 = vsel %vm508, %v406, %v604
        %v637 = vsel %vm509, %v409, %v605
        %v638 = vsel %vm510, %v414, %v606
        %v639 = vsel %vm511, %v417, %v607
        %v640 = vsel %vm512, %v422, %v608
        %v641 = vsel %vm513, %v425, %v609
        %v642 = vsel %vm514, %v430, %v610
        %v643 = vsel %vm515, %v433, %v611
        %v644 = vsel %vm516, %v438, %v612
        %v645 = vsel %vm517, %v441, %v613
        %v646 = vsel %vm518, %v446, %v614
        %v647 = vsel %vm519, %v449, %v615
        %v648 = vsel %vm520, %v454, %v616
        %v649 = vsel %vm521, %v457, %v617
        %v650 = vsel %vm522, %v462, %v618
        %v651 = vsel %vm523, %v465, %v619
        %v652 = vsel %vm524, %v470, %v620
        %v653 = vsel %vm525, %v473, %v621
        %v654 = vsel %vm526, %v478, %v622
        %v655 = vsel %vm527, %v481, %v623
        %v656 = vsel %vm528, %v486, %v624
        %v657 = vsel %vm529, %v489, %v625
        %v658 = vsel %vm530, %v494, %v626
        %v659 = vsel %vm531, %v497, %v627
        %v660 = vpack.c.bf16 %v629, %v628
        %v661 = vpack.c.bf16 %v631, %v630
        %v662 = vpack.c.bf16 %v633, %v632
        %v663 = vpack.c.bf16 %v635, %v634
        %v664 = vpack.c.bf16 %v637, %v636
        %v665 = vpack.c.bf16 %v639, %v638
        %v666 = vpack.c.bf16 %v641, %v640
        %v667 = vpack.c.bf16 %v643, %v642
        %v668 = vpack.c.bf16 %v645, %v644
        %v669 = vpack.c.bf16 %v647, %v646
        %v670 = vpack.c.bf16 %v649, %v648
        %v671 = vpack.c.bf16 %v651, %v650
        %v672 = vpack.c.bf16 %v653, %v652
        %v673 = vpack.c.bf16 %v655, %v654
        %v674 = vpack.c.bf16 %v657, %v656
        %v675 = vpack.c.bf16 %v659, %v658
        %v677 = vlaneseq
        %v678 = vshrl.u32 %v677, 7
        %v679 = vsub.s32 0, %v678
        %v680 = vrot.slane %v263, %v679
        %v681 = vlaneseq
        %v682 = vshrl.u32 %v681, 7
        %v683 = vsub.s32 1, %v682
        %v684 = vrot.slane %v263, %v683
        %v703 = vunpack.c.l.b16 %v229
        %v704 = vunpack.c.h.b16 %v229
        %v705 = vunpack.c.l.b16 %v230
        %v706 = vunpack.c.h.b16 %v230
        %v707 = vunpack.c.l.b16 %v231
        %v708 = vunpack.c.h.b16 %v231
        %v709 = vunpack.c.l.b16 %v232
        %v710 = vunpack.c.h.b16 %v232
        %v711 = vunpack.c.l.b16 %v233
        %v712 = vunpack.c.h.b16 %v233
        %v713 = vunpack.c.l.b16 %v234
        %v714 = vunpack.c.h.b16 %v234
        %v715 = vunpack.c.l.b16 %v235
        %v716 = vunpack.c.h.b16 %v235
        %v717 = vunpack.c.l.b16 %v236
        %v718 = vunpack.c.h.b16 %v236
        %v719 = vunpack.c.l.b16 %v237
        %v720 = vunpack.c.h.b16 %v237
        %v721 = vunpack.c.l.b16 %v238
        %v722 = vunpack.c.h.b16 %v238
        %v723 = vunpack.c.l.b16 %v239
        %v724 = vunpack.c.h.b16 %v239
        %v725 = vunpack.c.l.b16 %v240
        %v726 = vunpack.c.h.b16 %v240
        %v727 = vunpack.c.l.b16 %v241
        %v728 = vunpack.c.h.b16 %v241
        %v729 = vunpack.c.l.b16 %v242
        %v730 = vunpack.c.h.b16 %v242
        %v731 = vunpack.c.l.b16 %v243
        %v732 = vunpack.c.h.b16 %v243
        %v733 = vunpack.c.l.b16 %v244
        %v734 = vunpack.c.h.b16 %v244
        %v735 = vpack.c.b16 %v705, %v703
        %v736 = vpack.c.b16 %v706, %v704
        %v737 = vpack.c.b16 %v709, %v707
        %v738 = vpack.c.b16 %v710, %v708
        %v739 = vpack.c.b16 %v713, %v711
        %v740 = vpack.c.b16 %v714, %v712
        %v741 = vpack.c.b16 %v717, %v715
        %v742 = vpack.c.b16 %v718, %v716
        %v743 = vpack.c.b16 %v721, %v719
        %v744 = vpack.c.b16 %v722, %v720
        %v745 = vpack.c.b16 %v725, %v723
        %v746 = vpack.c.b16 %v726, %v724
        %v747 = vpack.c.b16 %v729, %v727
        %v748 = vpack.c.b16 %v730, %v728
        %v749 = vpack.c.b16 %v733, %v731
        %v750 = vpack.c.b16 %v734, %v732
        %767 = vmatprep.subr.bf16.mxu0 %v750
        %768 = vmatpush1.bf16.msra.mxu0 %v749
        %769 = vmatprep.subr.bf16.mxu0 %v748
        %770 = vmatpush1.bf16.msra.mxu0 %v747
        %771 = vmatprep.subr.bf16.mxu0 %v746
        %772 = vmatpush1.bf16.msra.mxu0 %v745
        %773 = vmatprep.subr.bf16.mxu0 %v744
        %774 = vmatpush1.bf16.msra.mxu0 %v743
        %775 = vmatprep.subr.bf16.mxu0 %v742
        %776 = vmatpush1.bf16.msra.mxu0 %v741
        %777 = vmatprep.subr.bf16.mxu0 %v740
        %778 = vmatpush1.bf16.msra.mxu0 %v739
        %779 = vmatprep.subr.bf16.mxu0 %v738
        %780 = vmatpush1.bf16.msra.mxu0 %v737
        %781 = vmatprep.subr.bf16.mxu0 %v736
        %782 = vmatpush1.bf16.msra.mxu0 %v735
        %783 = vmatprep.subr.bf16.mxu0 0
        %784 = vmatpush2.bf16.msra.mxu0 0
        %785 = vmatprep.subr.bf16.mxu0 0
        %786 = vmatpush2.bf16.msra.mxu0 0
        %787 = vmatprep.subr.bf16.mxu0 0
        %788 = vmatpush2.bf16.msra.mxu0 0
        %789 = vmatprep.subr.bf16.mxu0 0
        %790 = vmatpush2.bf16.msra.mxu0 0
        %791 = vmatprep.subr.bf16.mxu0 0
        %792 = vmatpush2.bf16.msra.mxu0 0
        %793 = vmatprep.subr.bf16.mxu0 0
        %794 = vmatpush2.bf16.msra.mxu0 0
        %795 = vmatprep.subr.bf16.mxu0 0
        %796 = vmatpush2.bf16.msra.mxu0 0
        %797 = vmatprep.subr.bf16.mxu0 0
        %798 = vmatpush2.bf16.msra.mxu0 0
        %799 = vmatprep.mubr.bf16.mxu0 0
        %800 = vmatmul.mubr.bf16.gmra.mxu0 %v660
        %v801 = vpop.f32.mrf.mxu0
        %v802 = vadd.f32 %v680, %v801
        %v803 = vpop.f32.mrf.mxu0
        %v804 = vadd.f32 %v684, %v803
        %v805 = vpop.f32.mrf.mxu0
        %v806 = vadd.f32 %v680, %v805
        %v807 = vpop.f32.mrf.mxu0
        %v808 = vadd.f32 %v684, %v807
        %809 = vmatprep.mubr.bf16.mxu0 0
        %810 = vmatmul.mubr.bf16.gmra.mxu0 %v661
        %v811 = vpop.f32.mrf.mxu0
        %v812 = vadd.f32 %v680, %v811
        %v813 = vpop.f32.mrf.mxu0
        %v814 = vadd.f32 %v684, %v813
        %v815 = vpop.f32.mrf.mxu0
        %v816 = vadd.f32 %v680, %v815
        %v817 = vpop.f32.mrf.mxu0
        %v818 = vadd.f32 %v684, %v817
        %819 = vmatprep.mubr.bf16.mxu0 0
        %820 = vmatmul.mubr.bf16.gmra.mxu0 %v662
        %v821 = vpop.f32.mrf.mxu0
        %v822 = vadd.f32 %v680, %v821
        %v823 = vpop.f32.mrf.mxu0
        %v824 = vadd.f32 %v684, %v823
        %v825 = vpop.f32.mrf.mxu0
        %v826 = vadd.f32 %v680, %v825
        %v827 = vpop.f32.mrf.mxu0
        %v828 = vadd.f32 %v684, %v827
        %829 = vmatprep.mubr.bf16.mxu0 0
        %830 = vmatmul.mubr.bf16.gmra.mxu0 %v663
        %v831 = vpop.f32.mrf.mxu0
        %v832 = vadd.f32 %v680, %v831
        %v833 = vpop.f32.mrf.mxu0
        %v834 = vadd.f32 %v684, %v833
        %v835 = vpop.f32.mrf.mxu0
        %v836 = vadd.f32 %v680, %v835
        %v837 = vpop.f32.mrf.mxu0
        %v838 = vadd.f32 %v684, %v837
        %839 = vmatprep.mubr.bf16.mxu0 0
        %840 = vmatmul.mubr.bf16.gmra.mxu0 %v664
        %v841 = vpop.f32.mrf.mxu0
        %v842 = vadd.f32 %v680, %v841
        %v843 = vpop.f32.mrf.mxu0
        %v844 = vadd.f32 %v684, %v843
        %v845 = vpop.f32.mrf.mxu0
        %v846 = vadd.f32 %v680, %v845
        %v847 = vpop.f32.mrf.mxu0
        %v848 = vadd.f32 %v684, %v847
        %849 = vmatprep.mubr.bf16.mxu0 0
        %850 = vmatmul.mubr.bf16.gmra.mxu0 %v665
        %v851 = vpop.f32.mrf.mxu0
        %v852 = vadd.f32 %v680, %v851
        %v853 = vpop.f32.mrf.mxu0
        %v854 = vadd.f32 %v684, %v853
        %v855 = vpop.f32.mrf.mxu0
        %v856 = vadd.f32 %v680, %v855
        %v857 = vpop.f32.mrf.mxu0
        %v858 = vadd.f32 %v684, %v857
        %859 = vmatprep.mubr.bf16.mxu0 0
        %860 = vmatmul.mubr.bf16.gmra.mxu0 %v666
        %v861 = vpop.f32.mrf.mxu0
        %v862 = vadd.f32 %v680, %v861
        %v863 = vpop.f32.mrf.mxu0
        %v864 = vadd.f32 %v684, %v863
        %v865 = vpop.f32.mrf.mxu0
        %v866 = vadd.f32 %v680, %v865
        %v867 = vpop.f32.mrf.mxu0
        %v868 = vadd.f32 %v684, %v867
        %869 = vmatprep.mubr.bf16.mxu0 0
        %870 = vmatmul.mubr.bf16.gmra.mxu0 %v667
        %v871 = vpop.f32.mrf.mxu0
        %v872 = vadd.f32 %v680, %v871
        %v873 = vpop.f32.mrf.mxu0
        %v874 = vadd.f32 %v684, %v873
        %v875 = vpop.f32.mrf.mxu0
        %v876 = vadd.f32 %v680, %v875
        %v877 = vpop.f32.mrf.mxu0
        %v878 = vadd.f32 %v684, %v877
        %879 = vmatprep.mubr.bf16.mxu0 0
        %880 = vmatmul.mubr.bf16.gmra.mxu0 %v668
        %v881 = vpop.f32.mrf.mxu0
        %v882 = vadd.f32 %v680, %v881
        %v883 = vpop.f32.mrf.mxu0
        %v884 = vadd.f32 %v684, %v883
        %v885 = vpop.f32.mrf.mxu0
        %v886 = vadd.f32 %v680, %v885
        %v887 = vpop.f32.mrf.mxu0
        %v888 = vadd.f32 %v684, %v887
        %889 = vmatprep.mubr.bf16.mxu0 0
        %890 = vmatmul.mubr.bf16.gmra.mxu0 %v669
        %v891 = vpop.f32.mrf.mxu0
        %v892 = vadd.f32 %v680, %v891
        %v893 = vpop.f32.mrf.mxu0
        %v894 = vadd.f32 %v684, %v893
        %v895 = vpop.f32.mrf.mxu0
        %v896 = vadd.f32 %v680, %v895
        %v897 = vpop.f32.mrf.mxu0
        %v898 = vadd.f32 %v684, %v897
        %899 = vmatprep.mubr.bf16.mxu0 0
        %900 = vmatmul.mubr.bf16.gmra.mxu0 %v670
        %v901 = vpop.f32.mrf.mxu0
        %v902 = vadd.f32 %v680, %v901
        %v903 = vpop.f32.mrf.mxu0
        %v904 = vadd.f32 %v684, %v903
        %v905 = vpop.f32.mrf.mxu0
        %v906 = vadd.f32 %v680, %v905
        %v907 = vpop.f32.mrf.mxu0
        %v908 = vadd.f32 %v684, %v907
        %909 = vmatprep.mubr.bf16.mxu0 0
        %910 = vmatmul.mubr.bf16.gmra.mxu0 %v671
        %v911 = vpop.f32.mrf.mxu0
        %v912 = vadd.f32 %v680, %v911
        %v913 = vpop.f32.mrf.mxu0
        %v914 = vadd.f32 %v684, %v913
        %v915 = vpop.f32.mrf.mxu0
        %v916 = vadd.f32 %v680, %v915
        %v917 = vpop.f32.mrf.mxu0
        %v918 = vadd.f32 %v684, %v917
        %919 = vmatprep.mubr.bf16.mxu0 0
        %920 = vmatmul.mubr.bf16.gmra.mxu0 %v672
        %v921 = vpop.f32.mrf.mxu0
        %v922 = vadd.f32 %v680, %v921
        %v923 = vpop.f32.mrf.mxu0
        %v924 = vadd.f32 %v684, %v923
        %v925 = vpop.f32.mrf.mxu0
        %v926 = vadd.f32 %v680, %v925
        %v927 = vpop.f32.mrf.mxu0
        %v928 = vadd.f32 %v684, %v927
        %929 = vmatprep.mubr.bf16.mxu0 0
        %930 = vmatmul.mubr.bf16.gmra.mxu0 %v673
        %v931 = vpop.f32.mrf.mxu0
        %v932 = vadd.f32 %v680, %v931
        %v933 = vpop.f32.mrf.mxu0
        %v934 = vadd.f32 %v684, %v933
        %v935 = vpop.f32.mrf.mxu0
        %v936 = vadd.f32 %v680, %v935
        %v937 = vpop.f32.mrf.mxu0
        %v938 = vadd.f32 %v684, %v937
        %939 = vmatprep.mubr.bf16.mxu0 0
        %940 = vmatmul.mubr.bf16.gmra.mxu0 %v674
        %v941 = vpop.f32.mrf.mxu0
        %v942 = vadd.f32 %v680, %v941
        %v943 = vpop.f32.mrf.mxu0
        %v944 = vadd.f32 %v684, %v943
        %v945 = vpop.f32.mrf.mxu0
        %v946 = vadd.f32 %v680, %v945
        %v947 = vpop.f32.mrf.mxu0
        %v948 = vadd.f32 %v684, %v947
        %949 = vmatprep.mubr.bf16.mxu0 0
        %950 = vmatmul.mubr.bf16.gmra.mxu0 %v675
        %v951 = vpop.f32.mrf.mxu0
        %v952 = vadd.f32 %v680, %v951
        %v953 = vpop.f32.mrf.mxu0
        %v954 = vadd.f32 %v684, %v953
        %v955 = vpop.f32.mrf.mxu0
        %v956 = vadd.f32 %v680, %v955
        %v957 = vpop.f32.mrf.mxu0
        %v958 = vadd.f32 %v684, %v957
        %959 = vdwg.mxu0
        %vm960 = vcmp.gt.f32.partialorder %v804, 0.0
        %vm961 = vcmp.gt.f32.partialorder %v808, 0.0
        %vm962 = vcmp.gt.f32.partialorder %v814, 0.0
        %vm963 = vcmp.gt.f32.partialorder %v818, 0.0
        %vm964 = vcmp.gt.f32.partialorder %v824, 0.0
        %vm965 = vcmp.gt.f32.partialorder %v828, 0.0
        %vm966 = vcmp.gt.f32.partialorder %v834, 0.0
        %vm967 = vcmp.gt.f32.partialorder %v838, 0.0
        %vm968 = vcmp.gt.f32.partialorder %v844, 0.0
        %vm969 = vcmp.gt.f32.partialorder %v848, 0.0
        %vm970 = vcmp.gt.f32.partialorder %v854, 0.0
        %vm971 = vcmp.gt.f32.partialorder %v858, 0.0
        %vm972 = vcmp.gt.f32.partialorder %v864, 0.0
        %vm973 = vcmp.gt.f32.partialorder %v868, 0.0
        %vm974 = vcmp.gt.f32.partialorder %v874, 0.0
        %vm975 = vcmp.gt.f32.partialorder %v878, 0.0
        %vm976 = vcmp.gt.f32.partialorder %v884, 0.0
        %vm977 = vcmp.gt.f32.partialorder %v888, 0.0
        %vm978 = vcmp.gt.f32.partialorder %v894, 0.0
        %vm979 = vcmp.gt.f32.partialorder %v898, 0.0
        %vm980 = vcmp.gt.f32.partialorder %v904, 0.0
        %vm981 = vcmp.gt.f32.partialorder %v908, 0.0
        %vm982 = vcmp.gt.f32.partialorder %v914, 0.0
        %vm983 = vcmp.gt.f32.partialorder %v918, 0.0
        %vm984 = vcmp.gt.f32.partialorder %v924, 0.0
        %vm985 = vcmp.gt.f32.partialorder %v928, 0.0
        %vm986 = vcmp.gt.f32.partialorder %v934, 0.0
        %vm987 = vcmp.gt.f32.partialorder %v938, 0.0
        %vm988 = vcmp.gt.f32.partialorder %v944, 0.0
        %vm989 = vcmp.gt.f32.partialorder %v948, 0.0
        %vm990 = vcmp.gt.f32.partialorder %v954, 0.0
        %vm991 = vcmp.gt.f32.partialorder %v958, 0.0
        %v992 = vmul.f32 %v804, 1.442695
        %v993 = vpow.pop %v992
        %v994 = vmul.f32 %v808, 1.442695
        %v995 = vpow.pop %v994
        %v996 = vmul.f32 %v814, 1.442695
        %v997 = vpow.pop %v996
        %v998 = vmul.f32 %v818, 1.442695
        %v999 = vpow.pop %v998
        %v1000 = vmul.f32 %v824, 1.442695
        %v1001 = vpow.pop %v1000
        %v1002 = vmul.f32 %v828, 1.442695
        %v1003 = vpow.pop %v1002
        %v1004 = vmul.f32 %v834, 1.442695
        %v1005 = vpow.pop %v1004
        %v1006 = vmul.f32 %v838, 1.442695
        %v1007 = vpow.pop %v1006
        %v1008 = vmul.f32 %v844, 1.442695
        %v1009 = vpow.pop %v1008
        %v1010 = vmul.f32 %v848, 1.442695
        %v1011 = vpow.pop %v1010
        %v1012 = vmul.f32 %v854, 1.442695
        %v1013 = vpow.pop %v1012
        %v1014 = vmul.f32 %v858, 1.442695
        %v1015 = vpow.pop %v1014
        %v1016 = vmul.f32 %v864, 1.442695
        %v1017 = vpow.pop %v1016
        %v1018 = vmul.f32 %v868, 1.442695
        %v1019 = vpow.pop %v1018
        %v1020 = vmul.f32 %v874, 1.442695
        %v1021 = vpow.pop %v1020
        %v1022 = vmul.f32 %v878, 1.442695
        %v1023 = vpow.pop %v1022
        %v1024 = vmul.f32 %v884, 1.442695
        %v1025 = vpow.pop %v1024
        %v1026 = vmul.f32 %v888, 1.442695
        %v1027 = vpow.pop %v1026
        %v1028 = vmul.f32 %v894, 1.442695
        %v1029 = vpow.pop %v1028
        %v1030 = vmul.f32 %v898, 1.442695
        %v1031 = vpow.pop %v1030
        %v1032 = vmul.f32 %v904, 1.442695
        %v1033 = vpow.pop %v1032
        %v1034 = vmul.f32 %v908, 1.442695
        %v1035 = vpow.pop %v1034
        %v1036 = vmul.f32 %v914, 1.442695
        %v1037 = vpow.pop %v1036
        %v1038 = vmul.f32 %v918, 1.442695
        %v1039 = vpow.pop %v1038
        %v1040 = vmul.f32 %v924, 1.442695
        %v1041 = vpow.pop %v1040
        %v1042 = vmul.f32 %v928, 1.442695
        %v1043 = vpow.pop %v1042
        %v1044 = vmul.f32 %v934, 1.442695
        %v1045 = vpow.pop %v1044
        %v1046 = vmul.f32 %v938, 1.442695
        %v1047 = vpow.pop %v1046
        %v1048 = vmul.f32 %v944, 1.442695
        %v1049 = vpow.pop %v1048
        %v1050 = vmul.f32 %v948, 1.442695
        %v1051 = vpow.pop %v1050
        %v1052 = vmul.f32 %v954, 1.442695
        %v1053 = vpow.pop %v1052
        %v1054 = vmul.f32 %v958, 1.442695
        %v1055 = vpow.pop %v1054
        %v1056 = vsub.f32 %v993, 1.0
        %v1057 = vsub.f32 %v995, 1.0
        %v1058 = vsub.f32 %v997, 1.0
        %v1059 = vsub.f32 %v999, 1.0
        %v1060 = vsub.f32 %v1001, 1.0
        %v1061 = vsub.f32 %v1003, 1.0
        %v1062 = vsub.f32 %v1005, 1.0
        %v1063 = vsub.f32 %v1007, 1.0
        %v1064 = vsub.f32 %v1009, 1.0
        %v1065 = vsub.f32 %v1011, 1.0
        %v1066 = vsub.f32 %v1013, 1.0
        %v1067 = vsub.f32 %v1015, 1.0
        %v1068 = vsub.f32 %v1017, 1.0
        %v1069 = vsub.f32 %v1019, 1.0
        %v1070 = vsub.f32 %v1021, 1.0
        %v1071 = vsub.f32 %v1023, 1.0
        %v1072 = vsub.f32 %v1025, 1.0
        %v1073 = vsub.f32 %v1027, 1.0
        %v1074 = vsub.f32 %v1029, 1.0
        %v1075 = vsub.f32 %v1031, 1.0
        %v1076 = vsub.f32 %v1033, 1.0
        %v1077 = vsub.f32 %v1035, 1.0
        %v1078 = vsub.f32 %v1037, 1.0
        %v1079 = vsub.f32 %v1039, 1.0
        %v1080 = vsub.f32 %v1041, 1.0
        %v1081 = vsub.f32 %v1043, 1.0
        %v1082 = vsub.f32 %v1045, 1.0
        %v1083 = vsub.f32 %v1047, 1.0
        %v1084 = vsub.f32 %v1049, 1.0
        %v1085 = vsub.f32 %v1051, 1.0
        %v1086 = vsub.f32 %v1053, 1.0
        %v1087 = vsub.f32 %v1055, 1.0
        %v1088 = vsel %vm960, %v804, %v1056
        %v1089 = vsel %vm961, %v808, %v1057
        %v1090 = vsel %vm962, %v814, %v1058
        %v1091 = vsel %vm963, %v818, %v1059
        %v1092 = vsel %vm964, %v824, %v1060
        %v1093 = vsel %vm965, %v828, %v1061
        %v1094 = vsel %vm966, %v834, %v1062
        %v1095 = vsel %vm967, %v838, %v1063
        %v1096 = vsel %vm968, %v844, %v1064
        %v1097 = vsel %vm969, %v848, %v1065
        %v1098 = vsel %vm970, %v854, %v1066
        %v1099 = vsel %vm971, %v858, %v1067
        %v1100 = vsel %vm972, %v864, %v1068
        %v1101 = vsel %vm973, %v868, %v1069
        %v1102 = vsel %vm974, %v874, %v1070
        %v1103 = vsel %vm975, %v878, %v1071
        %v1104 = vsel %vm976, %v884, %v1072
        %v1105 = vsel %vm977, %v888, %v1073
        %v1106 = vsel %vm978, %v894, %v1074
        %v1107 = vsel %vm979, %v898, %v1075
        %v1108 = vsel %vm980, %v904, %v1076
        %v1109 = vsel %vm981, %v908, %v1077
        %v1110 = vsel %vm982, %v914, %v1078
        %v1111 = vsel %vm983, %v918, %v1079
        %v1112 = vsel %vm984, %v924, %v1080
        %v1113 = vsel %vm985, %v928, %v1081
        %v1114 = vsel %vm986, %v934, %v1082
        %v1115 = vsel %vm987, %v938, %v1083
        %v1116 = vsel %vm988, %v944, %v1084
        %v1117 = vsel %vm989, %v948, %v1085
        %v1118 = vsel %vm990, %v954, %v1086
        %v1119 = vsel %vm991, %v958, %v1087
        %v1120 = vpack.c.bf16 %v1089, %v1088
        %v1121 = vpack.c.bf16 %v1091, %v1090
        %v1122 = vpack.c.bf16 %v1093, %v1092
        %v1123 = vpack.c.bf16 %v1095, %v1094
        %v1124 = vpack.c.bf16 %v1097, %v1096
        %v1125 = vpack.c.bf16 %v1099, %v1098
        %v1126 = vpack.c.bf16 %v1101, %v1100
        %v1127 = vpack.c.bf16 %v1103, %v1102
        %v1128 = vpack.c.bf16 %v1105, %v1104
        %v1129 = vpack.c.bf16 %v1107, %v1106
        %v1130 = vpack.c.bf16 %v1109, %v1108
        %v1131 = vpack.c.bf16 %v1111, %v1110
        %v1132 = vpack.c.bf16 %v1113, %v1112
        %v1133 = vpack.c.bf16 %v1115, %v1114
        %v1134 = vpack.c.bf16 %v1117, %v1116
        %v1135 = vpack.c.bf16 %v1119, %v1118
        %v1152 = vunpack.c.l.b16 %v245
        %v1153 = vunpack.c.l.b16 %v246
        %v1154 = vunpack.c.l.b16 %v247
        %v1155 = vunpack.c.l.b16 %v248
        %v1156 = vunpack.c.l.b16 %v249
        %v1157 = vunpack.c.l.b16 %v250
        %v1158 = vunpack.c.l.b16 %v251
        %v1159 = vunpack.c.l.b16 %v252
        %v1160 = vunpack.c.l.b16 %v253
        %v1161 = vunpack.c.l.b16 %v254
        %v1162 = vunpack.c.l.b16 %v255
        %v1163 = vunpack.c.l.b16 %v256
        %v1164 = vunpack.c.l.b16 %v257
        %v1165 = vunpack.c.l.b16 %v258
        %v1166 = vunpack.c.l.b16 %v259
        %v1167 = vunpack.c.l.b16 %v260
        %v1168 = vpack.c.b16 %v1153, %v1152
        %v1169 = vpack.c.b16 %v1155, %v1154
        %v1170 = vpack.c.b16 %v1157, %v1156
        %v1171 = vpack.c.b16 %v1159, %v1158
        %v1172 = vpack.c.b16 %v1161, %v1160
        %v1173 = vpack.c.b16 %v1163, %v1162
        %v1174 = vpack.c.b16 %v1165, %v1164
        %v1175 = vpack.c.b16 %v1167, %v1166
        %1184 = vmatprep.subr.bf16.mxu0 0
        %1185 = vmatpush1.bf16.msra.mxu0 %v1175
        %1186 = vmatprep.subr.bf16.mxu0 0
        %1187 = vmatpush1.bf16.msra.mxu0 %v1174
        %1188 = vmatprep.subr.bf16.mxu0 0
        %1189 = vmatpush1.bf16.msra.mxu0 %v1173
        %1190 = vmatprep.subr.bf16.mxu0 0
        %1191 = vmatpush1.bf16.msra.mxu0 %v1172
        %1192 = vmatprep.subr.bf16.mxu0 0
        %1193 = vmatpush1.bf16.msra.mxu0 %v1171
        %1194 = vmatprep.subr.bf16.mxu0 0
        %1195 = vmatpush1.bf16.msra.mxu0 %v1170
        %1196 = vmatprep.subr.bf16.mxu0 0
        %1197 = vmatpush1.bf16.msra.mxu0 %v1169
        %1198 = vmatprep.subr.bf16.mxu0 0
        %1199 = vmatpush1.bf16.msra.mxu0 %v1168
        %1200 = vmatprep.subr.bf16.mxu0 0
        %1201 = vmatpush2.bf16.msra.mxu0 0
        %1202 = vmatprep.subr.bf16.mxu0 0
        %1203 = vmatpush2.bf16.msra.mxu0 0
        %1204 = vmatprep.subr.bf16.mxu0 0
        %1205 = vmatpush2.bf16.msra.mxu0 0
        %1206 = vmatprep.subr.bf16.mxu0 0
        %1207 = vmatpush2.bf16.msra.mxu0 0
        %1208 = vmatprep.subr.bf16.mxu0 0
        %1209 = vmatpush2.bf16.msra.mxu0 0
        %1210 = vmatprep.subr.bf16.mxu0 0
        %1211 = vmatpush2.bf16.msra.mxu0 0
        %1212 = vmatprep.subr.bf16.mxu0 0
        %1213 = vmatpush2.bf16.msra.mxu0 0
        %1214 = vmatprep.subr.bf16.mxu0 0
        %1215 = vmatpush2.bf16.msra.mxu0 0
        %1216 = vmatprep.mubr.bf16.mxu0 0
        %1217 = vmatmul.mubr.bf16.gmra.mxu0 %v1120
        %v1218 = vpop.f32.mrf.mxu0
        %v1219 = vadd.f32 %v264, %v1218
        %v1220 = vpop.f32.mrf.mxu0
        %v1221 = vpop.f32.mrf.mxu0
        %v1222 = vadd.f32 %v264, %v1221
        %v1223 = vpop.f32.mrf.mxu0
        %1224 = vmatprep.mubr.bf16.mxu0 0
        %1225 = vmatmul.mubr.bf16.gmra.mxu0 %v1121
        %v1226 = vpop.f32.mrf.mxu0
        %v1227 = vadd.f32 %v264, %v1226
        %v1228 = vpop.f32.mrf.mxu0
        %v1229 = vpop.f32.mrf.mxu0
        %v1230 = vadd.f32 %v264, %v1229
        %v1231 = vpop.f32.mrf.mxu0
        %1232 = vmatprep.mubr.bf16.mxu0 0
        %1233 = vmatmul.mubr.bf16.gmra.mxu0 %v1122
        %v1234 = vpop.f32.mrf.mxu0
        %v1235 = vadd.f32 %v264, %v1234
        %v1236 = vpop.f32.mrf.mxu0
        %v1237 = vpop.f32.mrf.mxu0
        %v1238 = vadd.f32 %v264, %v1237
        %v1239 = vpop.f32.mrf.mxu0
        %1240 = vmatprep.mubr.bf16.mxu0 0
        %1241 = vmatmul.mubr.bf16.gmra.mxu0 %v1123
        %v1242 = vpop.f32.mrf.mxu0
        %v1243 = vadd.f32 %v264, %v1242
        %v1244 = vpop.f32.mrf.mxu0
        %v1245 = vpop.f32.mrf.mxu0
        %v1246 = vadd.f32 %v264, %v1245
        %v1247 = vpop.f32.mrf.mxu0
        %1248 = vmatprep.mubr.bf16.mxu0 0
        %1249 = vmatmul.mubr.bf16.gmra.mxu0 %v1124
        %v1250 = vpop.f32.mrf.mxu0
        %v1251 = vadd.f32 %v264, %v1250
        %v1252 = vpop.f32.mrf.mxu0
        %v1253 = vpop.f32.mrf.mxu0
        %v1254 = vadd.f32 %v264, %v1253
        %v1255 = vpop.f32.mrf.mxu0
        %1256 = vmatprep.mubr.bf16.mxu0 0
        %1257 = vmatmul.mubr.bf16.gmra.mxu0 %v1125
        %v1258 = vpop.f32.mrf.mxu0
        %v1259 = vadd.f32 %v264, %v1258
        %v1260 = vpop.f32.mrf.mxu0
        %v1261 = vpop.f32.mrf.mxu0
        %v1262 = vadd.f32 %v264, %v1261
        %v1263 = vpop.f32.mrf.mxu0
        %1264 = vmatprep.mubr.bf16.mxu0 0
        %1265 = vmatmul.mubr.bf16.gmra.mxu0 %v1126
        %v1266 = vpop.f32.mrf.mxu0
        %v1267 = vadd.f32 %v264, %v1266
        %v1268 = vpop.f32.mrf.mxu0
        %v1269 = vpop.f32.mrf.mxu0
        %v1270 = vadd.f32 %v264, %v1269
        %v1271 = vpop.f32.mrf.mxu0
        %1272 = vmatprep.mubr.bf16.mxu0 0
        %1273 = vmatmul.mubr.bf16.gmra.mxu0 %v1127
        %v1274 = vpop.f32.mrf.mxu0
        %v1275 = vadd.f32 %v264, %v1274
        %v1276 = vpop.f32.mrf.mxu0
        %v1277 = vpop.f32.mrf.mxu0
        %v1278 = vadd.f32 %v264, %v1277
        %v1279 = vpop.f32.mrf.mxu0
        %1280 = vmatprep.mubr.bf16.mxu0 0
        %1281 = vmatmul.mubr.bf16.gmra.mxu0 %v1128
        %v1282 = vpop.f32.mrf.mxu0
        %v1283 = vadd.f32 %v264, %v1282
        %v1284 = vpop.f32.mrf.mxu0
        %v1285 = vpop.f32.mrf.mxu0
        %v1286 = vadd.f32 %v264, %v1285
        %v1287 = vpop.f32.mrf.mxu0
        %1288 = vmatprep.mubr.bf16.mxu0 0
        %1289 = vmatmul.mubr.bf16.gmra.mxu0 %v1129
        %v1290 = vpop.f32.mrf.mxu0
        %v1291 = vadd.f32 %v264, %v1290
        %v1292 = vpop.f32.mrf.mxu0
        %v1293 = vpop.f32.mrf.mxu0
        %v1294 = vadd.f32 %v264, %v1293
        %v1295 = vpop.f32.mrf.mxu0
        %1296 = vmatprep.mubr.bf16.mxu0 0
        %1297 = vmatmul.mubr.bf16.gmra.mxu0 %v1130
        %v1298 = vpop.f32.mrf.mxu0
        %v1299 = vadd.f32 %v264, %v1298
        %v1300 = vpop.f32.mrf.mxu0
        %v1301 = vpop.f32.mrf.mxu0
        %v1302 = vadd.f32 %v264, %v1301
        %v1303 = vpop.f32.mrf.mxu0
        %1304 = vmatprep.mubr.bf16.mxu0 0
        %1305 = vmatmul.mubr.bf16.gmra.mxu0 %v1131
        %v1306 = vpop.f32.mrf.mxu0
        %v1307 = vadd.f32 %v264, %v1306
        %v1308 = vpop.f32.mrf.mxu0
        %v1309 = vpop.f32.mrf.mxu0
        %v1310 = vadd.f32 %v264, %v1309
        %v1311 = vpop.f32.mrf.mxu0
        %1312 = vmatprep.mubr.bf16.mxu0 0
        %1313 = vmatmul.mubr.bf16.gmra.mxu0 %v1132
        %v1314 = vpop.f32.mrf.mxu0
        %v1315 = vadd.f32 %v264, %v1314
        %v1316 = vpop.f32.mrf.mxu0
        %v1317 = vpop.f32.mrf.mxu0
        %v1318 = vadd.f32 %v264, %v1317
        %v1319 = vpop.f32.mrf.mxu0
        %1320 = vmatprep.mubr.bf16.mxu0 0
        %1321 = vmatmul.mubr.bf16.gmra.mxu0 %v1133
        %v1322 = vpop.f32.mrf.mxu0
        %v1323 = vadd.f32 %v264, %v1322
        %v1324 = vpop.f32.mrf.mxu0
        %v1325 = vpop.f32.mrf.mxu0
        %v1326 = vadd.f32 %v264, %v1325
        %v1327 = vpop.f32.mrf.mxu0
        %1328 = vmatprep.mubr.bf16.mxu0 0
        %1329 = vmatmul.mubr.bf16.gmra.mxu0 %v1134
        %v1330 = vpop.f32.mrf.mxu0
        %v1331 = vadd.f32 %v264, %v1330
        %v1332 = vpop.f32.mrf.mxu0
        %v1333 = vpop.f32.mrf.mxu0
        %v1334 = vadd.f32 %v264, %v1333
        %v1335 = vpop.f32.mrf.mxu0
        %1336 = vmatprep.mubr.bf16.mxu0 0
        %1337 = vmatmul.mubr.bf16.gmra.mxu0 %v1135
        %v1338 = vpop.f32.mrf.mxu0
        %v1339 = vadd.f32 %v264, %v1338
        %v1340 = vpop.f32.mrf.mxu0
        %v1341 = vpop.f32.mrf.mxu0
        %v1342 = vadd.f32 %v264, %v1341
        %v1343 = vpop.f32.mrf.mxu0
        %1344 = vdwg.mxu0
        %vm1345 = vcmask 31744
        %v1346 = vsel %vm1345, %v1219, -inf
        %v1347 = vrot.slane %v1346, 4
        %v1348 = vmax.f32 %v1346, %v1347
        %v1349 = vrot.slane %v1348, 2
        %v1350 = vmax.f32 %v1348, %v1349
        %v1351 = vrot.slane %v1350, 1
        %v1352 = vmax.f32 %v1350, %v1351
        %v1353 = vsel %vm1345, %v1222, -inf
        %v1354 = vrot.slane %v1353, 4
        %v1355 = vmax.f32 %v1353, %v1354
        %v1356 = vrot.slane %v1355, 2
        %v1357 = vmax.f32 %v1355, %v1356
        %v1358 = vrot.slane %v1357, 1
        %v1359 = vmax.f32 %v1357, %v1358
        %v1360 = vsel %vm1345, %v1227, -inf
        %v1361 = vrot.slane %v1360, 4
        %v1362 = vmax.f32 %v1360, %v1361
        %v1363 = vrot.slane %v1362, 2
        %v1364 = vmax.f32 %v1362, %v1363
        %v1365 = vrot.slane %v1364, 1
        %v1366 = vmax.f32 %v1364, %v1365
        %v1367 = vsel %vm1345, %v1230, -inf
        %v1368 = vrot.slane %v1367, 4
        %v1369 = vmax.f32 %v1367, %v1368
        %v1370 = vrot.slane %v1369, 2
        %v1371 = vmax.f32 %v1369, %v1370
        %v1372 = vrot.slane %v1371, 1
        %v1373 = vmax.f32 %v1371, %v1372
        %v1374 = vsel %vm1345, %v1235, -inf
        %v1375 = vrot.slane %v1374, 4
        %v1376 = vmax.f32 %v1374, %v1375
        %v1377 = vrot.slane %v1376, 2
        %v1378 = vmax.f32 %v1376, %v1377
        %v1379 = vrot.slane %v1378, 1
        %v1380 = vmax.f32 %v1378, %v1379
        %v1381 = vsel %vm1345, %v1238, -inf
        %v1382 = vrot.slane %v1381, 4
        %v1383 = vmax.f32 %v1381, %v1382
        %v1384 = vrot.slane %v1383, 2
        %v1385 = vmax.f32 %v1383, %v1384
        %v1386 = vrot.slane %v1385, 1
        %v1387 = vmax.f32 %v1385, %v1386
        %v1388 = vsel %vm1345, %v1243, -inf
        %v1389 = vrot.slane %v1388, 4
        %v1390 = vmax.f32 %v1388, %v1389
        %v1391 = vrot.slane %v1390, 2
        %v1392 = vmax.f32 %v1390, %v1391
        %v1393 = vrot.slane %v1392, 1
        %v1394 = vmax.f32 %v1392, %v1393
        %v1395 = vsel %vm1345, %v1246, -inf
        %v1396 = vrot.slane %v1395, 4
        %v1397 = vmax.f32 %v1395, %v1396
        %v1398 = vrot.slane %v1397, 2
        %v1399 = vmax.f32 %v1397, %v1398
        %v1400 = vrot.slane %v1399, 1
        %v1401 = vmax.f32 %v1399, %v1400
        %v1402 = vsel %vm1345, %v1251, -inf
        %v1403 = vrot.slane %v1402, 4
        %v1404 = vmax.f32 %v1402, %v1403
        %v1405 = vrot.slane %v1404, 2
        %v1406 = vmax.f32 %v1404, %v1405
        %v1407 = vrot.slane %v1406, 1
        %v1408 = vmax.f32 %v1406, %v1407
        %v1409 = vsel %vm1345, %v1254, -inf
        %v1410 = vrot.slane %v1409, 4
        %v1411 = vmax.f32 %v1409, %v1410
        %v1412 = vrot.slane %v1411, 2
        %v1413 = vmax.f32 %v1411, %v1412
        %v1414 = vrot.slane %v1413, 1
        %v1415 = vmax.f32 %v1413, %v1414
        %v1416 = vsel %vm1345, %v1259, -inf
        %v1417 = vrot.slane %v1416, 4
        %v1418 = vmax.f32 %v1416, %v1417
        %v1419 = vrot.slane %v1418, 2
        %v1420 = vmax.f32 %v1418, %v1419
        %v1421 = vrot.slane %v1420, 1
        %v1422 = vmax.f32 %v1420, %v1421
        %v1423 = vsel %vm1345, %v1262, -inf
        %v1424 = vrot.slane %v1423, 4
        %v1425 = vmax.f32 %v1423, %v1424
        %v1426 = vrot.slane %v1425, 2
        %v1427 = vmax.f32 %v1425, %v1426
        %v1428 = vrot.slane %v1427, 1
        %v1429 = vmax.f32 %v1427, %v1428
        %v1430 = vsel %vm1345, %v1267, -inf
        %v1431 = vrot.slane %v1430, 4
        %v1432 = vmax.f32 %v1430, %v1431
        %v1433 = vrot.slane %v1432, 2
        %v1434 = vmax.f32 %v1432, %v1433
        %v1435 = vrot.slane %v1434, 1
        %v1436 = vmax.f32 %v1434, %v1435
        %v1437 = vsel %vm1345, %v1270, -inf
        %v1438 = vrot.slane %v1437, 4
        %v1439 = vmax.f32 %v1437, %v1438
        %v1440 = vrot.slane %v1439, 2
        %v1441 = vmax.f32 %v1439, %v1440
        %v1442 = vrot.slane %v1441, 1
        %v1443 = vmax.f32 %v1441, %v1442
        %v1444 = vsel %vm1345, %v1275, -inf
        %v1445 = vrot.slane %v1444, 4
        %v1446 = vmax.f32 %v1444, %v1445
        %v1447 = vrot.slane %v1446, 2
        %v1448 = vmax.f32 %v1446, %v1447
        %v1449 = vrot.slane %v1448, 1
        %v1450 = vmax.f32 %v1448, %v1449
        %v1451 = vsel %vm1345, %v1278, -inf
        %v1452 = vrot.slane %v1451, 4
        %v1453 = vmax.f32 %v1451, %v1452
        %v1454 = vrot.slane %v1453, 2
        %v1455 = vmax.f32 %v1453, %v1454
        %v1456 = vrot.slane %v1455, 1
        %v1457 = vmax.f32 %v1455, %v1456
        %v1458 = vsel %vm1345, %v1283, -inf
        %v1459 = vrot.slane %v1458, 4
        %v1460 = vmax.f32 %v1458, %v1459
        %v1461 = vrot.slane %v1460, 2
        %v1462 = vmax.f32 %v1460, %v1461
        %v1463 = vrot.slane %v1462, 1
        %v1464 = vmax.f32 %v1462, %v1463
        %v1465 = vsel %vm1345, %v1286, -inf
        %v1466 = vrot.slane %v1465, 4
        %v1467 = vmax.f32 %v1465, %v1466
        %v1468 = vrot.slane %v1467, 2
        %v1469 = vmax.f32 %v1467, %v1468
        %v1470 = vrot.slane %v1469, 1
        %v1471 = vmax.f32 %v1469, %v1470
        %v1472 = vsel %vm1345, %v1291, -inf
        %v1473 = vrot.slane %v1472, 4
        %v1474 = vmax.f32 %v1472, %v1473
        %v1475 = vrot.slane %v1474, 2
        %v1476 = vmax.f32 %v1474, %v1475
        %v1477 = vrot.slane %v1476, 1
        %v1478 = vmax.f32 %v1476, %v1477
        %v1479 = vsel %vm1345, %v1294, -inf
        %v1480 = vrot.slane %v1479, 4
        %v1481 = vmax.f32 %v1479, %v1480
        %v1482 = vrot.slane %v1481, 2
        %v1483 = vmax.f32 %v1481, %v1482
        %v1484 = vrot.slane %v1483, 1
        %v1485 = vmax.f32 %v1483, %v1484
        %v1486 = vsel %vm1345, %v1299, -inf
        %v1487 = vrot.slane %v1486, 4
        %v1488 = vmax.f32 %v1486, %v1487
        %v1489 = vrot.slane %v1488, 2
        %v1490 = vmax.f32 %v1488, %v1489
        %v1491 = vrot.slane %v1490, 1
        %v1492 = vmax.f32 %v1490, %v1491
        %v1493 = vsel %vm1345, %v1302, -inf
        %v1494 = vrot.slane %v1493, 4
        %v1495 = vmax.f32 %v1493, %v1494
        %v1496 = vrot.slane %v1495, 2
        %v1497 = vmax.f32 %v1495, %v1496
        %v1498 = vrot.slane %v1497, 1
        %v1499 = vmax.f32 %v1497, %v1498
        %v1500 = vsel %vm1345, %v1307, -inf
        %v1501 = vrot.slane %v1500, 4
        %v1502 = vmax.f32 %v1500, %v1501
        %v1503 = vrot.slane %v1502, 2
        %v1504 = vmax.f32 %v1502, %v1503
        %v1505 = vrot.slane %v1504, 1
        %v1506 = vmax.f32 %v1504, %v1505
        %v1507 = vsel %vm1345, %v1310, -inf
        %v1508 = vrot.slane %v1507, 4
        %v1509 = vmax.f32 %v1507, %v1508
        %v1510 = vrot.slane %v1509, 2
        %v1511 = vmax.f32 %v1509, %v1510
        %v1512 = vrot.slane %v1511, 1
        %v1513 = vmax.f32 %v1511, %v1512
        %v1514 = vsel %vm1345, %v1315, -inf
        %v1515 = vrot.slane %v1514, 4
        %v1516 = vmax.f32 %v1514, %v1515
        %v1517 = vrot.slane %v1516, 2
        %v1518 = vmax.f32 %v1516, %v1517
        %v1519 = vrot.slane %v1518, 1
        %v1520 = vmax.f32 %v1518, %v1519
        %v1521 = vsel %vm1345, %v1318, -inf
        %v1522 = vrot.slane %v1521, 4
        %v1523 = vmax.f32 %v1521, %v1522
        %v1524 = vrot.slane %v1523, 2
        %v1525 = vmax.f32 %v1523, %v1524
        %v1526 = vrot.slane %v1525, 1
        %v1527 = vmax.f32 %v1525, %v1526
        %v1528 = vsel %vm1345, %v1323, -inf
        %v1529 = vrot.slane %v1528, 4
        %v1530 = vmax.f32 %v1528, %v1529
        %v1531 = vrot.slane %v1530, 2
        %v1532 = vmax.f32 %v1530, %v1531
        %v1533 = vrot.slane %v1532, 1
        %v1534 = vmax.f32 %v1532, %v1533
        %v1535 = vsel %vm1345, %v1326, -inf
        %v1536 = vrot.slane %v1535, 4
        %v1537 = vmax.f32 %v1535, %v1536
        %v1538 = vrot.slane %v1537, 2
        %v1539 = vmax.f32 %v1537, %v1538
        %v1540 = vrot.slane %v1539, 1
        %v1541 = vmax.f32 %v1539, %v1540
        %v1542 = vsel %vm1345, %v1331, -inf
        %v1543 = vrot.slane %v1542, 4
        %v1544 = vmax.f32 %v1542, %v1543
        %v1545 = vrot.slane %v1544, 2
        %v1546 = vmax.f32 %v1544, %v1545
        %v1547 = vrot.slane %v1546, 1
        %v1548 = vmax.f32 %v1546, %v1547
        %v1549 = vsel %vm1345, %v1334, -inf
        %v1550 = vrot.slane %v1549, 4
        %v1551 = vmax.f32 %v1549, %v1550
        %v1552 = vrot.slane %v1551, 2
        %v1553 = vmax.f32 %v1551, %v1552
        %v1554 = vrot.slane %v1553, 1
        %v1555 = vmax.f32 %v1553, %v1554
        %v1556 = vsel %vm1345, %v1339, -inf
        %v1557 = vrot.slane %v1556, 4
        %v1558 = vmax.f32 %v1556, %v1557
        %v1559 = vrot.slane %v1558, 2
        %v1560 = vmax.f32 %v1558, %v1559
        %v1561 = vrot.slane %v1560, 1
        %v1562 = vmax.f32 %v1560, %v1561
        %v1563 = vsel %vm1345, %v1342, -inf
        %v1564 = vrot.slane %v1563, 4
        %v1565 = vmax.f32 %v1563, %v1564
        %v1566 = vrot.slane %v1565, 2
        %v1567 = vmax.f32 %v1565, %v1566
        %v1568 = vrot.slane %v1567, 1
        %v1569 = vmax.f32 %v1567, %v1568
        %v1570 = vsub.f32 %v1219, %v1352
        %v1571 = vsub.f32 %v1222, %v1359
        %v1572 = vsub.f32 %v1227, %v1366
        %v1573 = vsub.f32 %v1230, %v1373
        %v1574 = vsub.f32 %v1235, %v1380
        %v1575 = vsub.f32 %v1238, %v1387
        %v1576 = vsub.f32 %v1243, %v1394
        %v1577 = vsub.f32 %v1246, %v1401
        %v1578 = vsub.f32 %v1251, %v1408
        %v1579 = vsub.f32 %v1254, %v1415
        %v1580 = vsub.f32 %v1259, %v1422
        %v1581 = vsub.f32 %v1262, %v1429
        %v1582 = vsub.f32 %v1267, %v1436
        %v1583 = vsub.f32 %v1270, %v1443
        %v1584 = vsub.f32 %v1275, %v1450
        %v1585 = vsub.f32 %v1278, %v1457
        %v1586 = vsub.f32 %v1283, %v1464
        %v1587 = vsub.f32 %v1286, %v1471
        %v1588 = vsub.f32 %v1291, %v1478
        %v1589 = vsub.f32 %v1294, %v1485
        %v1590 = vsub.f32 %v1299, %v1492
        %v1591 = vsub.f32 %v1302, %v1499
        %v1592 = vsub.f32 %v1307, %v1506
        %v1593 = vsub.f32 %v1310, %v1513
        %v1594 = vsub.f32 %v1315, %v1520
        %v1595 = vsub.f32 %v1318, %v1527
        %v1596 = vsub.f32 %v1323, %v1534
        %v1597 = vsub.f32 %v1326, %v1541
        %v1598 = vsub.f32 %v1331, %v1548
        %v1599 = vsub.f32 %v1334, %v1555
        %v1600 = vsub.f32 %v1339, %v1562
        %v1601 = vsub.f32 %v1342, %v1569
        %v1602 = vmul.f32 %v1570, 1.442695
        %v1603 = vpow.pop %v1602
        %v1604 = vmul.f32 %v1571, 1.442695
        %v1605 = vpow.pop %v1604
        %v1606 = vmul.f32 %v1572, 1.442695
        %v1607 = vpow.pop %v1606
        %v1608 = vmul.f32 %v1573, 1.442695
        %v1609 = vpow.pop %v1608
        %v1610 = vmul.f32 %v1574, 1.442695
        %v1611 = vpow.pop %v1610
        %v1612 = vmul.f32 %v1575, 1.442695
        %v1613 = vpow.pop %v1612
        %v1614 = vmul.f32 %v1576, 1.442695
        %v1615 = vpow.pop %v1614
        %v1616 = vmul.f32 %v1577, 1.442695
        %v1617 = vpow.pop %v1616
        %v1618 = vmul.f32 %v1578, 1.442695
        %v1619 = vpow.pop %v1618
        %v1620 = vmul.f32 %v1579, 1.442695
        %v1621 = vpow.pop %v1620
        %v1622 = vmul.f32 %v1580, 1.442695
        %v1623 = vpow.pop %v1622
        %v1624 = vmul.f32 %v1581, 1.442695
        %v1625 = vpow.pop %v1624
        %v1626 = vmul.f32 %v1582, 1.442695
        %v1627 = vpow.pop %v1626
        %v1628 = vmul.f32 %v1583, 1.442695
        %v1629 = vpow.pop %v1628
        %v1630 = vmul.f32 %v1584, 1.442695
        %v1631 = vpow.pop %v1630
        %v1632 = vmul.f32 %v1585, 1.442695
        %v1633 = vpow.pop %v1632
        %v1634 = vmul.f32 %v1586, 1.442695
        %v1635 = vpow.pop %v1634
        %v1636 = vmul.f32 %v1587, 1.442695
        %v1637 = vpow.pop %v1636
        %v1638 = vmul.f32 %v1588, 1.442695
        %v1639 = vpow.pop %v1638
        %v1640 = vmul.f32 %v1589, 1.442695
        %v1641 = vpow.pop %v1640
        %v1642 = vmul.f32 %v1590, 1.442695
        %v1643 = vpow.pop %v1642
        %v1644 = vmul.f32 %v1591, 1.442695
        %v1645 = vpow.pop %v1644
        %v1646 = vmul.f32 %v1592, 1.442695
        %v1647 = vpow.pop %v1646
        %v1648 = vmul.f32 %v1593, 1.442695
        %v1649 = vpow.pop %v1648
        %v1650 = vmul.f32 %v1594, 1.442695
        %v1651 = vpow.pop %v1650
        %v1652 = vmul.f32 %v1595, 1.442695
        %v1653 = vpow.pop %v1652
        %v1654 = vmul.f32 %v1596, 1.442695
        %v1655 = vpow.pop %v1654
        %v1656 = vmul.f32 %v1597, 1.442695
        %v1657 = vpow.pop %v1656
        %v1658 = vmul.f32 %v1598, 1.442695
        %v1659 = vpow.pop %v1658
        %v1660 = vmul.f32 %v1599, 1.442695
        %v1661 = vpow.pop %v1660
        %v1662 = vmul.f32 %v1600, 1.442695
        %v1663 = vpow.pop %v1662
        %v1664 = vmul.f32 %v1601, 1.442695
        %v1665 = vpow.pop %v1664
        %v1666 = vsel %vm1345, %v1603, 0.0
        %v1667 = vrot.slane %v1666, 4
        %v1668 = vadd.f32 %v1666, %v1667
        %v1669 = vrot.slane %v1668, 2
        %v1670 = vadd.f32 %v1668, %v1669
        %v1671 = vrot.slane %v1670, 1
        %v1672 = vadd.f32 %v1670, %v1671
        %v1673 = vsel %vm1345, %v1605, 0.0
        %v1674 = vrot.slane %v1673, 4
        %v1675 = vadd.f32 %v1673, %v1674
        %v1676 = vrot.slane %v1675, 2
        %v1677 = vadd.f32 %v1675, %v1676
        %v1678 = vrot.slane %v1677, 1
        %v1679 = vadd.f32 %v1677, %v1678
        %v1680 = vsel %vm1345, %v1607, 0.0
        %v1681 = vrot.slane %v1680, 4
        %v1682 = vadd.f32 %v1680, %v1681
        %v1683 = vrot.slane %v1682, 2
        %v1684 = vadd.f32 %v1682, %v1683
        %v1685 = vrot.slane %v1684, 1
        %v1686 = vadd.f32 %v1684, %v1685
        %v1687 = vsel %vm1345, %v1609, 0.0
        %v1688 = vrot.slane %v1687, 4
        %v1689 = vadd.f32 %v1687, %v1688
        %v1690 = vrot.slane %v1689, 2
        %v1691 = vadd.f32 %v1689, %v1690
        %v1692 = vrot.slane %v1691, 1
        %v1693 = vadd.f32 %v1691, %v1692
        %v1694 = vsel %vm1345, %v1611, 0.0
        %v1695 = vrot.slane %v1694, 4
        %v1696 = vadd.f32 %v1694, %v1695
        %v1697 = vrot.slane %v1696, 2
        %v1698 = vadd.f32 %v1696, %v1697
        %v1699 = vrot.slane %v1698, 1
        %v1700 = vadd.f32 %v1698, %v1699
        %v1701 = vsel %vm1345, %v1613, 0.0
        %v1702 = vrot.slane %v1701, 4
        %v1703 = vadd.f32 %v1701, %v1702
        %v1704 = vrot.slane %v1703, 2
        %v1705 = vadd.f32 %v1703, %v1704
        %v1706 = vrot.slane %v1705, 1
        %v1707 = vadd.f32 %v1705, %v1706
        %v1708 = vsel %vm1345, %v1615, 0.0
        %v1709 = vrot.slane %v1708, 4
        %v1710 = vadd.f32 %v1708, %v1709
        %v1711 = vrot.slane %v1710, 2
        %v1712 = vadd.f32 %v1710, %v1711
        %v1713 = vrot.slane %v1712, 1
        %v1714 = vadd.f32 %v1712, %v1713
        %v1715 = vsel %vm1345, %v1617, 0.0
        %v1716 = vrot.slane %v1715, 4
        %v1717 = vadd.f32 %v1715, %v1716
        %v1718 = vrot.slane %v1717, 2
        %v1719 = vadd.f32 %v1717, %v1718
        %v1720 = vrot.slane %v1719, 1
        %v1721 = vadd.f32 %v1719, %v1720
        %v1722 = vsel %vm1345, %v1619, 0.0
        %v1723 = vrot.slane %v1722, 4
        %v1724 = vadd.f32 %v1722, %v1723
        %v1725 = vrot.slane %v1724, 2
        %v1726 = vadd.f32 %v1724, %v1725
        %v1727 = vrot.slane %v1726, 1
        %v1728 = vadd.f32 %v1726, %v1727
        %v1729 = vsel %vm1345, %v1621, 0.0
        %v1730 = vrot.slane %v1729, 4
        %v1731 = vadd.f32 %v1729, %v1730
        %v1732 = vrot.slane %v1731, 2
        %v1733 = vadd.f32 %v1731, %v1732
        %v1734 = vrot.slane %v1733, 1
        %v1735 = vadd.f32 %v1733, %v1734
        %v1736 = vsel %vm1345, %v1623, 0.0
        %v1737 = vrot.slane %v1736, 4
        %v1738 = vadd.f32 %v1736, %v1737
        %v1739 = vrot.slane %v1738, 2
        %v1740 = vadd.f32 %v1738, %v1739
        %v1741 = vrot.slane %v1740, 1
        %v1742 = vadd.f32 %v1740, %v1741
        %v1743 = vsel %vm1345, %v1625, 0.0
        %v1744 = vrot.slane %v1743, 4
        %v1745 = vadd.f32 %v1743, %v1744
        %v1746 = vrot.slane %v1745, 2
        %v1747 = vadd.f32 %v1745, %v1746
        %v1748 = vrot.slane %v1747, 1
        %v1749 = vadd.f32 %v1747, %v1748
        %v1750 = vsel %vm1345, %v1627, 0.0
        %v1751 = vrot.slane %v1750, 4
        %v1752 = vadd.f32 %v1750, %v1751
        %v1753 = vrot.slane %v1752, 2
        %v1754 = vadd.f32 %v1752, %v1753
        %v1755 = vrot.slane %v1754, 1
        %v1756 = vadd.f32 %v1754, %v1755
        %v1757 = vsel %vm1345, %v1629, 0.0
        %v1758 = vrot.slane %v1757, 4
        %v1759 = vadd.f32 %v1757, %v1758
        %v1760 = vrot.slane %v1759, 2
        %v1761 = vadd.f32 %v1759, %v1760
        %v1762 = vrot.slane %v1761, 1
        %v1763 = vadd.f32 %v1761, %v1762
        %v1764 = vsel %vm1345, %v1631, 0.0
        %v1765 = vrot.slane %v1764, 4
        %v1766 = vadd.f32 %v1764, %v1765
        %v1767 = vrot.slane %v1766, 2
        %v1768 = vadd.f32 %v1766, %v1767
        %v1769 = vrot.slane %v1768, 1
        %v1770 = vadd.f32 %v1768, %v1769
        %v1771 = vsel %vm1345, %v1633, 0.0
        %v1772 = vrot.slane %v1771, 4
        %v1773 = vadd.f32 %v1771, %v1772
        %v1774 = vrot.slane %v1773, 2
        %v1775 = vadd.f32 %v1773, %v1774
        %v1776 = vrot.slane %v1775, 1
        %v1777 = vadd.f32 %v1775, %v1776
        %v1778 = vsel %vm1345, %v1635, 0.0
        %v1779 = vrot.slane %v1778, 4
        %v1780 = vadd.f32 %v1778, %v1779
        %v1781 = vrot.slane %v1780, 2
        %v1782 = vadd.f32 %v1780, %v1781
        %v1783 = vrot.slane %v1782, 1
        %v1784 = vadd.f32 %v1782, %v1783
        %v1785 = vsel %vm1345, %v1637, 0.0
        %v1786 = vrot.slane %v1785, 4
        %v1787 = vadd.f32 %v1785, %v1786
        %v1788 = vrot.slane %v1787, 2
        %v1789 = vadd.f32 %v1787, %v1788
        %v1790 = vrot.slane %v1789, 1
        %v1791 = vadd.f32 %v1789, %v1790
        %v1792 = vsel %vm1345, %v1639, 0.0
        %v1793 = vrot.slane %v1792, 4
        %v1794 = vadd.f32 %v1792, %v1793
        %v1795 = vrot.slane %v1794, 2
        %v1796 = vadd.f32 %v1794, %v1795
        %v1797 = vrot.slane %v1796, 1
        %v1798 = vadd.f32 %v1796, %v1797
        %v1799 = vsel %vm1345, %v1641, 0.0
        %v1800 = vrot.slane %v1799, 4
        %v1801 = vadd.f32 %v1799, %v1800
        %v1802 = vrot.slane %v1801, 2
        %v1803 = vadd.f32 %v1801, %v1802
        %v1804 = vrot.slane %v1803, 1
        %v1805 = vadd.f32 %v1803, %v1804
        %v1806 = vsel %vm1345, %v1643, 0.0
        %v1807 = vrot.slane %v1806, 4
        %v1808 = vadd.f32 %v1806, %v1807
        %v1809 = vrot.slane %v1808, 2
        %v1810 = vadd.f32 %v1808, %v1809
        %v1811 = vrot.slane %v1810, 1
        %v1812 = vadd.f32 %v1810, %v1811
        %v1813 = vsel %vm1345, %v1645, 0.0
        %v1814 = vrot.slane %v1813, 4
        %v1815 = vadd.f32 %v1813, %v1814
        %v1816 = vrot.slane %v1815, 2
        %v1817 = vadd.f32 %v1815, %v1816
        %v1818 = vrot.slane %v1817, 1
        %v1819 = vadd.f32 %v1817, %v1818
        %v1820 = vsel %vm1345, %v1647, 0.0
        %v1821 = vrot.slane %v1820, 4
        %v1822 = vadd.f32 %v1820, %v1821
        %v1823 = vrot.slane %v1822, 2
        %v1824 = vadd.f32 %v1822, %v1823
        %v1825 = vrot.slane %v1824, 1
        %v1826 = vadd.f32 %v1824, %v1825
        %v1827 = vsel %vm1345, %v1649, 0.0
        %v1828 = vrot.slane %v1827, 4
        %v1829 = vadd.f32 %v1827, %v1828
        %v1830 = vrot.slane %v1829, 2
        %v1831 = vadd.f32 %v1829, %v1830
        %v1832 = vrot.slane %v1831, 1
        %v1833 = vadd.f32 %v1831, %v1832
        %v1834 = vsel %vm1345, %v1651, 0.0
        %v1835 = vrot.slane %v1834, 4
        %v1836 = vadd.f32 %v1834, %v1835
        %v1837 = vrot.slane %v1836, 2
        %v1838 = vadd.f32 %v1836, %v1837
        %v1839 = vrot.slane %v1838, 1
        %v1840 = vadd.f32 %v1838, %v1839
        %v1841 = vsel %vm1345, %v1653, 0.0
        %v1842 = vrot.slane %v1841, 4
        %v1843 = vadd.f32 %v1841, %v1842
        %v1844 = vrot.slane %v1843, 2
        %v1845 = vadd.f32 %v1843, %v1844
        %v1846 = vrot.slane %v1845, 1
        %v1847 = vadd.f32 %v1845, %v1846
        %v1848 = vsel %vm1345, %v1655, 0.0
        %v1849 = vrot.slane %v1848, 4
        %v1850 = vadd.f32 %v1848, %v1849
        %v1851 = vrot.slane %v1850, 2
        %v1852 = vadd.f32 %v1850, %v1851
        %v1853 = vrot.slane %v1852, 1
        %v1854 = vadd.f32 %v1852, %v1853
        %v1855 = vsel %vm1345, %v1657, 0.0
        %v1856 = vrot.slane %v1855, 4
        %v1857 = vadd.f32 %v1855, %v1856
        %v1858 = vrot.slane %v1857, 2
        %v1859 = vadd.f32 %v1857, %v1858
        %v1860 = vrot.slane %v1859, 1
        %v1861 = vadd.f32 %v1859, %v1860
        %v1862 = vsel %vm1345, %v1659, 0.0
        %v1863 = vrot.slane %v1862, 4
        %v1864 = vadd.f32 %v1862, %v1863
        %v1865 = vrot.slane %v1864, 2
        %v1866 = vadd.f32 %v1864, %v1865
        %v1867 = vrot.slane %v1866, 1
        %v1868 = vadd.f32 %v1866, %v1867
        %v1869 = vsel %vm1345, %v1661, 0.0
        %v1870 = vrot.slane %v1869, 4
        %v1871 = vadd.f32 %v1869, %v1870
        %v1872 = vrot.slane %v1871, 2
        %v1873 = vadd.f32 %v1871, %v1872
        %v1874 = vrot.slane %v1873, 1
        %v1875 = vadd.f32 %v1873, %v1874
        %v1876 = vsel %vm1345, %v1663, 0.0
        %v1877 = vrot.slane %v1876, 4
        %v1878 = vadd.f32 %v1876, %v1877
        %v1879 = vrot.slane %v1878, 2
        %v1880 = vadd.f32 %v1878, %v1879
        %v1881 = vrot.slane %v1880, 1
        %v1882 = vadd.f32 %v1880, %v1881
        %v1883 = vsel %vm1345, %v1665, 0.0
        %v1884 = vrot.slane %v1883, 4
        %v1885 = vadd.f32 %v1883, %v1884
        %v1886 = vrot.slane %v1885, 2
        %v1887 = vadd.f32 %v1885, %v1886
        %v1888 = vrot.slane %v1887, 1
        %v1889 = vadd.f32 %v1887, %v1888
        %v1890 = vrcp.pop %v1672
        %v1891 = vrcp.pop %v1679
        %v1892 = vrcp.pop %v1686
        %v1893 = vrcp.pop %v1693
        %v1894 = vrcp.pop %v1700
        %v1895 = vrcp.pop %v1707
        %v1896 = vrcp.pop %v1714
        %v1897 = vrcp.pop %v1721
        %v1898 = vrcp.pop %v1728
        %v1899 = vrcp.pop %v1735
        %v1900 = vrcp.pop %v1742
        %v1901 = vrcp.pop %v1749
        %v1902 = vrcp.pop %v1756
        %v1903 = vrcp.pop %v1763
        %v1904 = vrcp.pop %v1770
        %v1905 = vrcp.pop %v1777
        %v1906 = vrcp.pop %v1784
        %v1907 = vrcp.pop %v1791
        %v1908 = vrcp.pop %v1798
        %v1909 = vrcp.pop %v1805
        %v1910 = vrcp.pop %v1812
        %v1911 = vrcp.pop %v1819
        %v1912 = vrcp.pop %v1826
        %v1913 = vrcp.pop %v1833
        %v1914 = vrcp.pop %v1840
        %v1915 = vrcp.pop %v1847
        %v1916 = vrcp.pop %v1854
        %v1917 = vrcp.pop %v1861
        %v1918 = vrcp.pop %v1868
        %v1919 = vrcp.pop %v1875
        %v1920 = vrcp.pop %v1882
        %v1921 = vrcp.pop %v1889
        %v1922 = vmul.f32 %v1603, %v1890
        %v1923 = vmul.f32 %v1605, %v1891
        %v1924 = vmul.f32 %v1607, %v1892
        %v1925 = vmul.f32 %v1609, %v1893
        %v1926 = vmul.f32 %v1611, %v1894
        %v1927 = vmul.f32 %v1613, %v1895
        %v1928 = vmul.f32 %v1615, %v1896
        %v1929 = vmul.f32 %v1617, %v1897
        %v1930 = vmul.f32 %v1619, %v1898
        %v1931 = vmul.f32 %v1621, %v1899
        %v1932 = vmul.f32 %v1623, %v1900
        %v1933 = vmul.f32 %v1625, %v1901
        %v1934 = vmul.f32 %v1627, %v1902
        %v1935 = vmul.f32 %v1629, %v1903
        %v1936 = vmul.f32 %v1631, %v1904
        %v1937 = vmul.f32 %v1633, %v1905
        %v1938 = vmul.f32 %v1635, %v1906
        %v1939 = vmul.f32 %v1637, %v1907
        %v1940 = vmul.f32 %v1639, %v1908
        %v1941 = vmul.f32 %v1641, %v1909
        %v1942 = vmul.f32 %v1643, %v1910
        %v1943 = vmul.f32 %v1645, %v1911
        %v1944 = vmul.f32 %v1647, %v1912
        %v1945 = vmul.f32 %v1649, %v1913
        %v1946 = vmul.f32 %v1651, %v1914
        %v1947 = vmul.f32 %v1653, %v1915
        %v1948 = vmul.f32 %v1655, %v1916
        %v1949 = vmul.f32 %v1657, %v1917
        %v1950 = vmul.f32 %v1659, %v1918
        %v1951 = vmul.f32 %v1661, %v1919
        %v1952 = vmul.f32 %v1663, %v1920
        %v1953 = vmul.f32 %v1665, %v1921
        %v1955 = vrot.slane %v265, 3
        %v1957 = vsel %vm1345, %v1922, 0
        %v1960 = vsel %vm1345, %v1923, 0
        %v1963 = vsel %vm1345, %v1924, 0
        %v1966 = vsel %vm1345, %v1925, 0
        %v1969 = vsel %vm1345, %v1926, 0
        %v1972 = vsel %vm1345, %v1927, 0
        %v1975 = vsel %vm1345, %v1928, 0
        %v1978 = vsel %vm1345, %v1929, 0
        %v1981 = vsel %vm1345, %v1930, 0
        %v1984 = vsel %vm1345, %v1931, 0
        %v1987 = vsel %vm1345, %v1932, 0
        %v1990 = vsel %vm1345, %v1933, 0
        %v1993 = vsel %vm1345, %v1934, 0
        %v1996 = vsel %vm1345, %v1935, 0
        %v1999 = vsel %vm1345, %v1936, 0
        %v2002 = vsel %vm1345, %v1937, 0
        %v2005 = vsel %vm1345, %v1938, 0
        %v2008 = vsel %vm1345, %v1939, 0
        %v2011 = vsel %vm1345, %v1940, 0
        %v2014 = vsel %vm1345, %v1941, 0
        %v2017 = vsel %vm1345, %v1942, 0
        %v2020 = vsel %vm1345, %v1943, 0
        %v2023 = vsel %vm1345, %v1944, 0
        %v2026 = vsel %vm1345, %v1945, 0
        %v2029 = vsel %vm1345, %v1946, 0
        %v2032 = vsel %vm1345, %v1947, 0
        %v2035 = vsel %vm1345, %v1948, 0
        %v2038 = vsel %vm1345, %v1949, 0
        %v2041 = vsel %vm1345, %v1950, 0
        %v2044 = vsel %vm1345, %v1951, 0
        %v2047 = vsel %vm1345, %v1952, 0
        %v2050 = vsel %vm1345, %v1953, 0
        %vm2052 = vcmask 1043456
        %v2053 = vsel %vm2052, %v1955, 0
        %2055 = vmatprep.subr.mxu0 0.0
        %2056 = vmatpush1.msra.mxu0 0.0
        %2057 = vmatprep.subr.mxu0 0.0
        %2058 = vmatpush1.msra.mxu0 0.0
        %2059 = vmatprep.subr.mxu0 0.0
        %2060 = vmatpush1.msra.mxu0 0.0
        %2061 = vmatprep.subr.mxu0 0.0
        %2062 = vmatpush1.msra.mxu0 0.0
        %2063 = vmatprep.subr.mxu0 0.0
        %2064 = vmatpush1.msra.mxu0 0.0
        %2065 = vmatprep.subr.mxu0 0.0
        %2066 = vmatpush1.msra.mxu0 0.0
        %2067 = vmatprep.subr.mxu0 0.0
        %2068 = vmatpush1.msra.mxu0 0.0
        %2069 = vmatprep.subr.mxu0 0.0
        %2070 = vmatpush1.msra.mxu0 0.0
        %2071 = vmatprep.subr.mxu0 0.0
        %2072 = vmatpush1.msra.mxu0 0.0
        %2073 = vmatprep.subr.mxu0 0.0
        %2074 = vmatpush1.msra.mxu0 0.0
        %2075 = vmatprep.subr.mxu0 0.0
        %2076 = vmatpush1.msra.mxu0 0.0
        %2077 = vmatprep.subr.mxu0 0.0
        %2078 = vmatpush1.msra.mxu0 0.0
        %2079 = vmatprep.subr.mxu0 0.0
        %2080 = vmatpush1.msra.mxu0 0.0
        %2081 = vmatprep.subr.mxu0 0.0
        %2082 = vmatpush1.msra.mxu0 0.0
        %2083 = vmatprep.subr.mxu0 0.0
        %2084 = vmatpush1.msra.mxu0 0.0
        %2085 = vmatprep.subr.mxu0 0.0
        %2086 = vmatpush1.msra.mxu0 %v2053
        %2087 = vmatprep.subr.mxu0 0.0
        %2088 = vmatpush2.msra.mxu0 0.0
        %2089 = vmatprep.subr.mxu0 0.0
        %2090 = vmatpush2.msra.mxu0 0.0
        %2091 = vmatprep.subr.mxu0 0.0
        %2092 = vmatpush2.msra.mxu0 0.0
        %2093 = vmatprep.subr.mxu0 0.0
        %2094 = vmatpush2.msra.mxu0 0.0
        %2095 = vmatprep.subr.mxu0 0.0
        %2096 = vmatpush2.msra.mxu0 0.0
        %2097 = vmatprep.subr.mxu0 0.0
        %2098 = vmatpush2.msra.mxu0 0.0
        %2099 = vmatprep.subr.mxu0 0.0
        %2100 = vmatpush2.msra.mxu0 0.0
        %2101 = vmatprep.subr.mxu0 0.0
        %2102 = vmatpush2.msra.mxu0 0.0
        %2103 = vmatprep.subr.mxu0 0.0
        %2104 = vmatpush2.msra.mxu0 0.0
        %2105 = vmatprep.subr.mxu0 0.0
        %2106 = vmatpush2.msra.mxu0 0.0
        %2107 = vmatprep.subr.mxu0 0.0
        %2108 = vmatpush2.msra.mxu0 0.0
        %2109 = vmatprep.subr.mxu0 0.0
        %2110 = vmatpush2.msra.mxu0 0.0
        %2111 = vmatprep.subr.mxu0 0.0
        %2112 = vmatpush2.msra.mxu0 0.0
        %2113 = vmatprep.subr.mxu0 0.0
        %2114 = vmatpush2.msra.mxu0 0.0
        %2115 = vmatprep.subr.mxu0 0.0
        %2116 = vmatpush2.msra.mxu0 0.0
        %2117 = vmatprep.subr.mxu0 0.0
        %2118 = vmatpush2.msra.mxu0 0.0
        %2119 = vmatprep.mubr.f32.mxu0 0.0
        %2120 = vmatmul.mubr.f32.gmra.mxu0 %v1957
        %v2121 = vpop.f32.mrf.mxu0
        %v2122 = vadd.f32 0.0, %v2121
        %v2123 = vpop.f32.mrf.mxu0
        %2124 = vmatprep.mubr.f32.mxu0 0.0
        %2125 = vmatmul.mubr.f32.gmra.mxu0 %v1960
        %v2126 = vpop.f32.mrf.mxu0
        %v2127 = vadd.f32 0.0, %v2126
        %v2128 = vpop.f32.mrf.mxu0
        %2129 = vmatprep.mubr.f32.mxu0 0.0
        %2130 = vmatmul.mubr.f32.gmra.mxu0 %v1963
        %v2131 = vpop.f32.mrf.mxu0
        %v2132 = vadd.f32 0.0, %v2131
        %v2133 = vpop.f32.mrf.mxu0
        %2134 = vmatprep.mubr.f32.mxu0 0.0
        %2135 = vmatmul.mubr.f32.gmra.mxu0 %v1966
        %v2136 = vpop.f32.mrf.mxu0
        %v2137 = vadd.f32 0.0, %v2136
        %v2138 = vpop.f32.mrf.mxu0
        %2139 = vmatprep.mubr.f32.mxu0 0.0
        %2140 = vmatmul.mubr.f32.gmra.mxu0 %v1969
        %v2141 = vpop.f32.mrf.mxu0
        %v2142 = vadd.f32 0.0, %v2141
        %v2143 = vpop.f32.mrf.mxu0
        %2144 = vmatprep.mubr.f32.mxu0 0.0
        %2145 = vmatmul.mubr.f32.gmra.mxu0 %v1972
        %v2146 = vpop.f32.mrf.mxu0
        %v2147 = vadd.f32 0.0, %v2146
        %v2148 = vpop.f32.mrf.mxu0
        %2149 = vmatprep.mubr.f32.mxu0 0.0
        %2150 = vmatmul.mubr.f32.gmra.mxu0 %v1975
        %v2151 = vpop.f32.mrf.mxu0
        %v2152 = vadd.f32 0.0, %v2151
        %v2153 = vpop.f32.mrf.mxu0
        %2154 = vmatprep.mubr.f32.mxu0 0.0
        %2155 = vmatmul.mubr.f32.gmra.mxu0 %v1978
        %v2156 = vpop.f32.mrf.mxu0
        %v2157 = vadd.f32 0.0, %v2156
        %v2158 = vpop.f32.mrf.mxu0
        %2159 = vmatprep.mubr.f32.mxu0 0.0
        %2160 = vmatmul.mubr.f32.gmra.mxu0 %v1981
        %v2161 = vpop.f32.mrf.mxu0
        %v2162 = vadd.f32 0.0, %v2161
        %v2163 = vpop.f32.mrf.mxu0
        %2164 = vmatprep.mubr.f32.mxu0 0.0
        %2165 = vmatmul.mubr.f32.gmra.mxu0 %v1984
        %v2166 = vpop.f32.mrf.mxu0
        %v2167 = vadd.f32 0.0, %v2166
        %v2168 = vpop.f32.mrf.mxu0
        %2169 = vmatprep.mubr.f32.mxu0 0.0
        %2170 = vmatmul.mubr.f32.gmra.mxu0 %v1987
        %v2171 = vpop.f32.mrf.mxu0
        %v2172 = vadd.f32 0.0, %v2171
        %v2173 = vpop.f32.mrf.mxu0
        %2174 = vmatprep.mubr.f32.mxu0 0.0
        %2175 = vmatmul.mubr.f32.gmra.mxu0 %v1990
        %v2176 = vpop.f32.mrf.mxu0
        %v2177 = vadd.f32 0.0, %v2176
        %v2178 = vpop.f32.mrf.mxu0
        %2179 = vmatprep.mubr.f32.mxu0 0.0
        %2180 = vmatmul.mubr.f32.gmra.mxu0 %v1993
        %v2181 = vpop.f32.mrf.mxu0
        %v2182 = vadd.f32 0.0, %v2181
        %v2183 = vpop.f32.mrf.mxu0
        %2184 = vmatprep.mubr.f32.mxu0 0.0
        %2185 = vmatmul.mubr.f32.gmra.mxu0 %v1996
        %v2186 = vpop.f32.mrf.mxu0
        %v2187 = vadd.f32 0.0, %v2186
        %v2188 = vpop.f32.mrf.mxu0
        %2189 = vmatprep.mubr.f32.mxu0 0.0
        %2190 = vmatmul.mubr.f32.gmra.mxu0 %v1999
        %v2191 = vpop.f32.mrf.mxu0
        %v2192 = vadd.f32 0.0, %v2191
        %v2193 = vpop.f32.mrf.mxu0
        %2194 = vmatprep.mubr.f32.mxu0 0.0
        %2195 = vmatmul.mubr.f32.gmra.mxu0 %v2002
        %v2196 = vpop.f32.mrf.mxu0
        %v2197 = vadd.f32 0.0, %v2196
        %v2198 = vpop.f32.mrf.mxu0
        %2199 = vmatprep.mubr.f32.mxu0 0.0
        %2200 = vmatmul.mubr.f32.gmra.mxu0 %v2005
        %v2201 = vpop.f32.mrf.mxu0
        %v2202 = vadd.f32 0.0, %v2201
        %v2203 = vpop.f32.mrf.mxu0
        %2204 = vmatprep.mubr.f32.mxu0 0.0
        %2205 = vmatmul.mubr.f32.gmra.mxu0 %v2008
        %v2206 = vpop.f32.mrf.mxu0
        %v2207 = vadd.f32 0.0, %v2206
        %v2208 = vpop.f32.mrf.mxu0
        %2209 = vmatprep.mubr.f32.mxu0 0.0
        %2210 = vmatmul.mubr.f32.gmra.mxu0 %v2011
        %v2211 = vpop.f32.mrf.mxu0
        %v2212 = vadd.f32 0.0, %v2211
        %v2213 = vpop.f32.mrf.mxu0
        %2214 = vmatprep.mubr.f32.mxu0 0.0
        %2215 = vmatmul.mubr.f32.gmra.mxu0 %v2014
        %v2216 = vpop.f32.mrf.mxu0
        %v2217 = vadd.f32 0.0, %v2216
        %v2218 = vpop.f32.mrf.mxu0
        %2219 = vmatprep.mubr.f32.mxu0 0.0
        %2220 = vmatmul.mubr.f32.gmra.mxu0 %v2017
        %v2221 = vpop.f32.mrf.mxu0
        %v2222 = vadd.f32 0.0, %v2221
        %v2223 = vpop.f32.mrf.mxu0
        %2224 = vmatprep.mubr.f32.mxu0 0.0
        %2225 = vmatmul.mubr.f32.gmra.mxu0 %v2020
        %v2226 = vpop.f32.mrf.mxu0
        %v2227 = vadd.f32 0.0, %v2226
        %v2228 = vpop.f32.mrf.mxu0
        %2229 = vmatprep.mubr.f32.mxu0 0.0
        %2230 = vmatmul.mubr.f32.gmra.mxu0 %v2023
        %v2231 = vpop.f32.mrf.mxu0
        %v2232 = vadd.f32 0.0, %v2231
        %v2233 = vpop.f32.mrf.mxu0
        %2234 = vmatprep.mubr.f32.mxu0 0.0
        %2235 = vmatmul.mubr.f32.gmra.mxu0 %v2026
        %v2236 = vpop.f32.mrf.mxu0
        %v2237 = vadd.f32 0.0, %v2236
        %v2238 = vpop.f32.mrf.mxu0
        %2239 = vmatprep.mubr.f32.mxu0 0.0
        %2240 = vmatmul.mubr.f32.gmra.mxu0 %v2029
        %v2241 = vpop.f32.mrf.mxu0
        %v2242 = vadd.f32 0.0, %v2241
        %v2243 = vpop.f32.mrf.mxu0
        %2244 = vmatprep.mubr.f32.mxu0 0.0
        %2245 = vmatmul.mubr.f32.gmra.mxu0 %v2032
        %v2246 = vpop.f32.mrf.mxu0
        %v2247 = vadd.f32 0.0, %v2246
        %v2248 = vpop.f32.mrf.mxu0
        %2249 = vmatprep.mubr.f32.mxu0 0.0
        %2250 = vmatmul.mubr.f32.gmra.mxu0 %v2035
        %v2251 = vpop.f32.mrf.mxu0
        %v2252 = vadd.f32 0.0, %v2251
        %v2253 = vpop.f32.mrf.mxu0
        %2254 = vmatprep.mubr.f32.mxu0 0.0
        %2255 = vmatmul.mubr.f32.gmra.mxu0 %v2038
        %v2256 = vpop.f32.mrf.mxu0
        %v2257 = vadd.f32 0.0, %v2256
        %v2258 = vpop.f32.mrf.mxu0
        %2259 = vmatprep.mubr.f32.mxu0 0.0
        %2260 = vmatmul.mubr.f32.gmra.mxu0 %v2041
        %v2261 = vpop.f32.mrf.mxu0
        %v2262 = vadd.f32 0.0, %v2261
        %v2263 = vpop.f32.mrf.mxu0
        %2264 = vmatprep.mubr.f32.mxu0 0.0
        %2265 = vmatmul.mubr.f32.gmra.mxu0 %v2044
        %v2266 = vpop.f32.mrf.mxu0
        %v2267 = vadd.f32 0.0, %v2266
        %v2268 = vpop.f32.mrf.mxu0
        %2269 = vmatprep.mubr.f32.mxu0 0.0
        %2270 = vmatmul.mubr.f32.gmra.mxu0 %v2047
        %v2271 = vpop.f32.mrf.mxu0
        %v2272 = vadd.f32 0.0, %v2271
        %v2273 = vpop.f32.mrf.mxu0
        %2274 = vmatprep.mubr.f32.mxu0 0.0
        %2275 = vmatmul.mubr.f32.gmra.mxu0 %v2050
        %v2276 = vpop.f32.mrf.mxu0
        %v2277 = vadd.f32 0.0, %v2276
        %v2278 = vpop.f32.mrf.mxu0
        %2279 = vdwg.mxu0
        %v2280 = vmul.f32 %v802, %v2122
        %v2281 = vmul.f32 %v806, %v2127
        %v2282 = vmul.f32 %v812, %v2132
        %v2283 = vmul.f32 %v816, %v2137
        %v2284 = vmul.f32 %v822, %v2142
        %v2285 = vmul.f32 %v826, %v2147
        %v2286 = vmul.f32 %v832, %v2152
        %v2287 = vmul.f32 %v836, %v2157
        %v2288 = vmul.f32 %v842, %v2162
        %v2289 = vmul.f32 %v846, %v2167
        %v2290 = vmul.f32 %v852, %v2172
        %v2291 = vmul.f32 %v856, %v2177
        %v2292 = vmul.f32 %v862, %v2182
        %v2293 = vmul.f32 %v866, %v2187
        %v2294 = vmul.f32 %v872, %v2192
        %v2295 = vmul.f32 %v876, %v2197
        %v2296 = vmul.f32 %v882, %v2202
        %v2297 = vmul.f32 %v886, %v2207
        %v2298 = vmul.f32 %v892, %v2212
        %v2299 = vmul.f32 %v896, %v2217
        %v2300 = vmul.f32 %v902, %v2222
        %v2301 = vmul.f32 %v906, %v2227
        %v2302 = vmul.f32 %v912, %v2232
        %v2303 = vmul.f32 %v916, %v2237
        %v2304 = vmul.f32 %v922, %v2242
        %v2305 = vmul.f32 %v926, %v2247
        %v2306 = vmul.f32 %v932, %v2252
        %v2307 = vmul.f32 %v936, %v2257
        %v2308 = vmul.f32 %v942, %v2262
        %v2309 = vmul.f32 %v946, %v2267
        %v2310 = vmul.f32 %v952, %v2272
        %v2311 = vmul.f32 %v956, %v2277
        %v2312 = vrot.slane %v2280, 4
        %v2313 = vadd.f32 %v2280, %v2312
        %v2314 = vrot.slane %v2313, 2
        %v2315 = vadd.f32 %v2313, %v2314
        %v2316 = vrot.slane %v2315, 1
        %v2317 = vadd.f32 %v2315, %v2316
        %v2318 = vrot.slane %v2281, 4
        %v2319 = vadd.f32 %v2281, %v2318
        %v2320 = vrot.slane %v2319, 2
        %v2321 = vadd.f32 %v2319, %v2320
        %v2322 = vrot.slane %v2321, 1
        %v2323 = vadd.f32 %v2321, %v2322
        %v2324 = vrot.slane %v2282, 4
        %v2325 = vadd.f32 %v2282, %v2324
        %v2326 = vrot.slane %v2325, 2
        %v2327 = vadd.f32 %v2325, %v2326
        %v2328 = vrot.slane %v2327, 1
        %v2329 = vadd.f32 %v2327, %v2328
        %v2330 = vrot.slane %v2283, 4
        %v2331 = vadd.f32 %v2283, %v2330
        %v2332 = vrot.slane %v2331, 2
        %v2333 = vadd.f32 %v2331, %v2332
        %v2334 = vrot.slane %v2333, 1
        %v2335 = vadd.f32 %v2333, %v2334
        %v2336 = vrot.slane %v2284, 4
        %v2337 = vadd.f32 %v2284, %v2336
        %v2338 = vrot.slane %v2337, 2
        %v2339 = vadd.f32 %v2337, %v2338
        %v2340 = vrot.slane %v2339, 1
        %v2341 = vadd.f32 %v2339, %v2340
        %v2342 = vrot.slane %v2285, 4
        %v2343 = vadd.f32 %v2285, %v2342
        %v2344 = vrot.slane %v2343, 2
        %v2345 = vadd.f32 %v2343, %v2344
        %v2346 = vrot.slane %v2345, 1
        %v2347 = vadd.f32 %v2345, %v2346
        %v2348 = vrot.slane %v2286, 4
        %v2349 = vadd.f32 %v2286, %v2348
        %v2350 = vrot.slane %v2349, 2
        %v2351 = vadd.f32 %v2349, %v2350
        %v2352 = vrot.slane %v2351, 1
        %v2353 = vadd.f32 %v2351, %v2352
        %v2354 = vrot.slane %v2287, 4
        %v2355 = vadd.f32 %v2287, %v2354
        %v2356 = vrot.slane %v2355, 2
        %v2357 = vadd.f32 %v2355, %v2356
        %v2358 = vrot.slane %v2357, 1
        %v2359 = vadd.f32 %v2357, %v2358
        %v2360 = vrot.slane %v2288, 4
        %v2361 = vadd.f32 %v2288, %v2360
        %v2362 = vrot.slane %v2361, 2
        %v2363 = vadd.f32 %v2361, %v2362
        %v2364 = vrot.slane %v2363, 1
        %v2365 = vadd.f32 %v2363, %v2364
        %v2366 = vrot.slane %v2289, 4
        %v2367 = vadd.f32 %v2289, %v2366
        %v2368 = vrot.slane %v2367, 2
        %v2369 = vadd.f32 %v2367, %v2368
        %v2370 = vrot.slane %v2369, 1
        %v2371 = vadd.f32 %v2369, %v2370
        %v2372 = vrot.slane %v2290, 4
        %v2373 = vadd.f32 %v2290, %v2372
        %v2374 = vrot.slane %v2373, 2
        %v2375 = vadd.f32 %v2373, %v2374
        %v2376 = vrot.slane %v2375, 1
        %v2377 = vadd.f32 %v2375, %v2376
        %v2378 = vrot.slane %v2291, 4
        %v2379 = vadd.f32 %v2291, %v2378
        %v2380 = vrot.slane %v2379, 2
        %v2381 = vadd.f32 %v2379, %v2380
        %v2382 = vrot.slane %v2381, 1
        %v2383 = vadd.f32 %v2381, %v2382
        %v2384 = vrot.slane %v2292, 4
        %v2385 = vadd.f32 %v2292, %v2384
        %v2386 = vrot.slane %v2385, 2
        %v2387 = vadd.f32 %v2385, %v2386
        %v2388 = vrot.slane %v2387, 1
        %v2389 = vadd.f32 %v2387, %v2388
        %v2390 = vrot.slane %v2293, 4
        %v2391 = vadd.f32 %v2293, %v2390
        %v2392 = vrot.slane %v2391, 2
        %v2393 = vadd.f32 %v2391, %v2392
        %v2394 = vrot.slane %v2393, 1
        %v2395 = vadd.f32 %v2393, %v2394
        %v2396 = vrot.slane %v2294, 4
        %v2397 = vadd.f32 %v2294, %v2396
        %v2398 = vrot.slane %v2397, 2
        %v2399 = vadd.f32 %v2397, %v2398
        %v2400 = vrot.slane %v2399, 1
        %v2401 = vadd.f32 %v2399, %v2400
        %v2402 = vrot.slane %v2295, 4
        %v2403 = vadd.f32 %v2295, %v2402
        %v2404 = vrot.slane %v2403, 2
        %v2405 = vadd.f32 %v2403, %v2404
        %v2406 = vrot.slane %v2405, 1
        %v2407 = vadd.f32 %v2405, %v2406
        %v2408 = vrot.slane %v2296, 4
        %v2409 = vadd.f32 %v2296, %v2408
        %v2410 = vrot.slane %v2409, 2
        %v2411 = vadd.f32 %v2409, %v2410
        %v2412 = vrot.slane %v2411, 1
        %v2413 = vadd.f32 %v2411, %v2412
        %v2414 = vrot.slane %v2297, 4
        %v2415 = vadd.f32 %v2297, %v2414
        %v2416 = vrot.slane %v2415, 2
        %v2417 = vadd.f32 %v2415, %v2416
        %v2418 = vrot.slane %v2417, 1
        %v2419 = vadd.f32 %v2417, %v2418
        %v2420 = vrot.slane %v2298, 4
        %v2421 = vadd.f32 %v2298, %v2420
        %v2422 = vrot.slane %v2421, 2
        %v2423 = vadd.f32 %v2421, %v2422
        %v2424 = vrot.slane %v2423, 1
        %v2425 = vadd.f32 %v2423, %v2424
        %v2426 = vrot.slane %v2299, 4
        %v2427 = vadd.f32 %v2299, %v2426
        %v2428 = vrot.slane %v2427, 2
        %v2429 = vadd.f32 %v2427, %v2428
        %v2430 = vrot.slane %v2429, 1
        %v2431 = vadd.f32 %v2429, %v2430
        %v2432 = vrot.slane %v2300, 4
        %v2433 = vadd.f32 %v2300, %v2432
        %v2434 = vrot.slane %v2433, 2
        %v2435 = vadd.f32 %v2433, %v2434
        %v2436 = vrot.slane %v2435, 1
        %v2437 = vadd.f32 %v2435, %v2436
        %v2438 = vrot.slane %v2301, 4
        %v2439 = vadd.f32 %v2301, %v2438
        %v2440 = vrot.slane %v2439, 2
        %v2441 = vadd.f32 %v2439, %v2440
        %v2442 = vrot.slane %v2441, 1
        %v2443 = vadd.f32 %v2441, %v2442
        %v2444 = vrot.slane %v2302, 4
        %v2445 = vadd.f32 %v2302, %v2444
        %v2446 = vrot.slane %v2445, 2
        %v2447 = vadd.f32 %v2445, %v2446
        %v2448 = vrot.slane %v2447, 1
        %v2449 = vadd.f32 %v2447, %v2448
        %v2450 = vrot.slane %v2303, 4
        %v2451 = vadd.f32 %v2303, %v2450
        %v2452 = vrot.slane %v2451, 2
        %v2453 = vadd.f32 %v2451, %v2452
        %v2454 = vrot.slane %v2453, 1
        %v2455 = vadd.f32 %v2453, %v2454
        %v2456 = vrot.slane %v2304, 4
        %v2457 = vadd.f32 %v2304, %v2456
        %v2458 = vrot.slane %v2457, 2
        %v2459 = vadd.f32 %v2457, %v2458
        %v2460 = vrot.slane %v2459, 1
        %v2461 = vadd.f32 %v2459, %v2460
        %v2462 = vrot.slane %v2305, 4
        %v2463 = vadd.f32 %v2305, %v2462
        %v2464 = vrot.slane %v2463, 2
        %v2465 = vadd.f32 %v2463, %v2464
        %v2466 = vrot.slane %v2465, 1
        %v2467 = vadd.f32 %v2465, %v2466
        %v2468 = vrot.slane %v2306, 4
        %v2469 = vadd.f32 %v2306, %v2468
        %v2470 = vrot.slane %v2469, 2
        %v2471 = vadd.f32 %v2469, %v2470
        %v2472 = vrot.slane %v2471, 1
        %v2473 = vadd.f32 %v2471, %v2472
        %v2474 = vrot.slane %v2307, 4
        %v2475 = vadd.f32 %v2307, %v2474
        %v2476 = vrot.slane %v2475, 2
        %v2477 = vadd.f32 %v2475, %v2476
        %v2478 = vrot.slane %v2477, 1
        %v2479 = vadd.f32 %v2477, %v2478
        %v2480 = vrot.slane %v2308, 4
        %v2481 = vadd.f32 %v2308, %v2480
        %v2482 = vrot.slane %v2481, 2
        %v2483 = vadd.f32 %v2481, %v2482
        %v2484 = vrot.slane %v2483, 1
        %v2485 = vadd.f32 %v2483, %v2484
        %v2486 = vrot.slane %v2309, 4
        %v2487 = vadd.f32 %v2309, %v2486
        %v2488 = vrot.slane %v2487, 2
        %v2489 = vadd.f32 %v2487, %v2488
        %v2490 = vrot.slane %v2489, 1
        %v2491 = vadd.f32 %v2489, %v2490
        %v2492 = vrot.slane %v2310, 4
        %v2493 = vadd.f32 %v2310, %v2492
        %v2494 = vrot.slane %v2493, 2
        %v2495 = vadd.f32 %v2493, %v2494
        %v2496 = vrot.slane %v2495, 1
        %v2497 = vadd.f32 %v2495, %v2496
        %v2498 = vrot.slane %v2311, 4
        %v2499 = vadd.f32 %v2311, %v2498
        %v2500 = vrot.slane %v2499, 2
        %v2501 = vadd.f32 %v2499, %v2500
        %v2502 = vrot.slane %v2501, 1
        %v2503 = vadd.f32 %v2501, %v2502
        %vm2536 = vcmask 1041409
        %v2537 = vsel %vm2536, %v2323, %v2317
        %vm2538 = vcmask 1042434
        %v2539 = vsel %vm2538, %v2329, %v2537
        %vm2540 = vcmask 1043459
        %v2541 = vsel %vm2540, %v2335, %v2539
        %vm2542 = vcmask 1044484
        %v2543 = vsel %vm2542, %v2341, %v2541
        %vm2544 = vcmask 1045509
        %v2545 = vsel %vm2544, %v2347, %v2543
        %vm2546 = vcmask 1046534
        %v2547 = vsel %vm2546, %v2353, %v2545
        %vm2548 = vcmask 1047559
        %v2549 = vsel %vm2548, %v2359, %v2547
        %v2550 = vsel %vm2536, %v2371, %v2365
        %v2551 = vsel %vm2538, %v2377, %v2550
        %v2552 = vsel %vm2540, %v2383, %v2551
        %v2553 = vsel %vm2542, %v2389, %v2552
        %v2554 = vsel %vm2544, %v2395, %v2553
        %v2555 = vsel %vm2546, %v2401, %v2554
        %v2556 = vsel %vm2548, %v2407, %v2555
        %v2557 = vsel %vm2536, %v2419, %v2413
        %v2558 = vsel %vm2538, %v2425, %v2557
        %v2559 = vsel %vm2540, %v2431, %v2558
        %v2560 = vsel %vm2542, %v2437, %v2559
        %v2561 = vsel %vm2544, %v2443, %v2560
        %v2562 = vsel %vm2546, %v2449, %v2561
        %v2563 = vsel %vm2548, %v2455, %v2562
        %v2564 = vsel %vm2536, %v2467, %v2461
        %v2565 = vsel %vm2538, %v2473, %v2564
        %v2566 = vsel %vm2540, %v2479, %v2565
        %v2567 = vsel %vm2542, %v2485, %v2566
        %v2568 = vsel %vm2544, %v2491, %v2567
        %v2569 = vsel %vm2546, %v2497, %v2568
        %v2570 = vsel %vm2548, %v2503, %v2569
        %2575 = vst [vmem:[%s164] sm:$0xff] %v2549
        %2576 = vst [vmem:[%s164 + $0x8] sm:$0xff] %v2556
        %2577 = vst [vmem:[%s164 + $0x10] sm:$0xff] %v2563
        %2578 = vst [vmem:[%s164 + $0x18] sm:$0xff] %v2570
        %s2579 = sand.u32 %s93, 1
        %s2580 = scalar_lea.sflag [#allocation3], %s2579
        %s2581 = sand.u32 %s93, 1
        %s2582 = smul.addr %s2581, 32
        %s2583 = scalar_lea.vmem [#allocation2], %s2582
        // Predicated region
        $region33: #{tpu_custom_call.1} parent=31 // pred_check
          %p2584 = pneg %p103
        $region34: #{tpu_custom_call.1} parent=31 // pred_check_branch
          %2586 = sbr.rel (%p2584) target = $region36
        $region35: #{tpu_custom_call.1} parent=31 // pred_region
          %s2587 = smul.u32 4, %s17
          %s2589 = ssub.s32 512, 512
          %2590 = vsyncadd %s2580, %s2589
          %s2591 = smul.addr %s2587, 128
          %s2592 = scalar_lea.hbm %s3, %s2591
          %s2593 = sshll.u32 %s2583, 4
          %s2594 = int_to_ptr.vmem [resolvable:$true] %s2593
          %2599 = dma.vmem_to_hbm [thread:$0]  %s2594, 512, %s2592, %s2580, 128, 128, 8
        $region36: #{tpu_custom_call.1} parent=31 // pred_fallthru
          _
      $region32: #{tpu_custom_call.1} parent=5 // pred_fallthru
        _
      %p2600 = scmp.le.s32.totalorder 2, %s12
      // Predicated region
      $region37: #{tpu_custom_call.1} parent=5 // pred_check
        %p2601 = pneg %p2600
      $region38: #{tpu_custom_call.1} parent=5 // pred_check_branch
        %2603 = sbr.rel (%p2601) target = $region40
      $region39: #{tpu_custom_call.1} parent=5 // pred_region
        %s2604 = ssub.s32 %s12, 2
        // Predicated region
        $region41: #{tpu_custom_call.1} parent=39 // pred_check
          %p2605 = pneg %p109
        $region42: #{tpu_custom_call.1} parent=39 // pred_check_branch
          %2607 = sbr.rel (%p2605) target = $region44
        $region43: #{tpu_custom_call.1} parent=39 // pred_region
          %s2608 = sand.u32 %s94, 1
          %s2609 = scalar_lea.sflag [#allocation3], %s2608
          %s2610 = sand.u32 %s94, 1
          %s2611 = smul.addr %s2610, 32
          %s2612 = scalar_lea.vmem [#allocation2], %s2611
          %2613 = dma.done %s2609, 512
        $region44: #{tpu_custom_call.1} parent=39 // pred_fallthru
          _
      $region40: #{tpu_custom_call.1} parent=5 // pred_fallthru
        _
    $region6: #{tpu_custom_call.1} parent=1 // loop_footer
      %s16 = sadd.s32 1, %s12
    $region7: #{tpu_custom_call.1} parent=1 // loop_footer_branch
      %11 = sbr.rel target = $region3
    $region8: #{tpu_custom_call.1} parent=1 // loop_exit
      _
    %2614 = vsyncpa [#allocation3], 1
    %s2615 = scalar_lea.sflag [#allocation3], 1
    %2616 = vsyncpa %s2615, 1

</llo_original>
